<compile_context>
chip_gen: v7x
topology: tpu7x:2x2x1
jax: 0.10.0
libtpu: 0.0.40
codegen_flags: <defaults>
</compile_context>

<pallas_src>
import functools

import jax
import jax.numpy as jnp
from jax import lax
from jax.experimental import pallas as pl
from jax.experimental.pallas import tpu as pltpu


def _swish(y):
    return y * jax.nn.sigmoid(y)


# ----------------------------------------------------------------------------
# Fused kernel: cv1 (1x1 conv + folded BN + Swish) -> cv2 (3x3 conv + folded
# BN + Swish) [-> + residual] on one TH-row tile (+ two 1-row halos).
# ----------------------------------------------------------------------------
def _bottleneck_kernel(x_ref, hu_ref, hd_ref, w1_ref, b1_ref, w2_ref, b2_ref,
                       o_ref, *, add, cdtype):
    TH, W, C1 = x_ref.shape
    Cm = w1_ref.shape[-1]
    C2 = o_ref.shape[-1]
    i = pl.program_id(1)
    last = pl.num_programs(1) - 1

    # --- cv1: 1x1 conv == one matmul over channels (BN scale pre-folded) ----
    xs = jnp.concatenate([hu_ref[...], x_ref[...], hd_ref[...]], axis=0)
    a1 = jnp.dot(xs.reshape((TH + 2) * W, C1).astype(cdtype), w1_ref[...],
                 preferred_element_type=jnp.float32)
    y = _swish(a1 + b1_ref[...]).reshape(TH + 2, W, Cm)        # f32

    # PyTorch pads cv1's OUTPUT for cv2: activation halo rows that lie outside
    # the image must be exactly zero (not swish(bias1)).
    row = lax.broadcasted_iota(jnp.int32, (TH + 2, 1, 1), 0)
    pad_row = ((row == 0) & (i == 0)) | ((row == TH + 1) & (i == last))
    y = jnp.where(pad_row, 0.0, y).astype(cdtype)

    # Zero W-padding of the activation; fold the dw taps onto the lane axis.
    zcol = jnp.zeros((TH + 2, 1, Cm), cdtype)
    yp = jnp.concatenate([zcol, y, zcol], axis=1)              # (TH+2, W+2, Cm)
    ycw = jnp.concatenate([yp[:, 0:W], yp[:, 1:W + 1], yp[:, 2:W + 2]],
                          axis=-1)                             # (TH+2, W, 3Cm)

    # --- cv2: three accumulating MXU matmuls over the dh taps (K = 3*Cm) ----
    acc = jnp.dot(ycw[0:TH].reshape(TH * W, 3 * Cm), w2_ref[0],
                  preferred_element_type=jnp.float32)
    acc = acc + jnp.dot(ycw[1:TH + 1].reshape(TH * W, 3 * Cm), w2_ref[1],
                        preferred_element_type=jnp.float32)
    acc = acc + jnp.dot(ycw[2:TH + 2].reshape(TH * W, 3 * Cm), w2_ref[2],
                        preferred_element_type=jnp.float32)
    out = _swish(acc + b2_ref[...])                            # f32
    if add:
        out = out + x_ref[...].reshape(TH * W, C2).astype(jnp.float32)
    o_ref[...] = out.reshape(TH, W, C2).astype(o_ref.dtype)


# ----------------------------------------------------------------------------
# Tile / VMEM sizing helpers
# ----------------------------------------------------------------------------
def _vmem_limit_bytes():
    try:
        cap = int(pltpu.get_tpu_info().vmem_capacity_bytes)
    except Exception:
        cap = 64 << 20          # conservative (v7x physical VMEM per core)
    return int(min(cap * 3 // 4, 96 << 20))


def _pick_row_tile(H, W, C1, Cm, C2, N, in_bytes, c_bytes, budget_bytes):
    """Largest divisor of H whose per-step working set fits the budget and
    that keeps >= 2 total grid steps (for v7x's two TensorCores)."""
    def step_bytes(th):
        io = 2 * W * in_bytes * (th * (C1 + C2) + 2 * C1)      # dbl-buffered tiles
        wts = 2 * (c_bytes * (C1 * Cm + 9 * Cm * C2) + 4 * (Cm + C2))
        act = (th + 2) * W * (C1 * c_bytes + Cm * 4 + 4 * Cm * c_bytes)
        acc = 2 * th * W * C2 * 4
        return io + wts + act + acc

    best = 1
    for th in range(1, H + 1):
        if H % th:
            continue
        if step_bytes(th) > budget_bytes:
            continue
        if N * (H // th) < 2 and th > 1:
            continue
        best = th
    return best


# ----------------------------------------------------------------------------
# Bottleneck wrapper (NCHW in / NCHW out, like the PyTorch module)
# ----------------------------------------------------------------------------
def bottleneck_forward(x_nchw, params, add, row_tile=None,
                       compute_dtype=jnp.bfloat16):
    x = jnp.transpose(x_nchw, (0, 2, 3, 1))                    # -> NHWC
    N, H, W, C1 = x.shape
    w1, w2 = params["w1"], params["w2"]
    Cm, C2 = w1.shape[1], w2.shape[-1]
    if add:
        assert C1 == C2, "shortcut add requires c1 == c2"

    cdtype = jnp.dtype(compute_dtype)
    vmem_limit = _vmem_limit_bytes()
    if row_tile is None:
        row_tile = _pick_row_tile(H, W, C1, Cm, C2, N,
                                  x.dtype.itemsize, cdtype.itemsize,
                                  budget_bytes=max(4 << 20, vmem_limit // 3))
    TH = row_tile
    assert H % TH == 0, "row_tile must divide H"
    nRT = H // TH

    # One-row halo side-arrays (tiny HBM traffic; no haloed-window copies).
    zrow = jnp.zeros((N, 1, W, C1), x.dtype)
    if nRT > 1:
        halo_up = jnp.concatenate([zrow, x[:, TH - 1::TH][:, :nRT - 1]], axis=1)
        halo_dn = jnp.concatenate([x[:, TH::TH], zrow], axis=1)
    else:
        halo_up, halo_dn = zrow, zrow                           # (N, nRT, W, C1)

    # Fold BN scale into the conv weights; pre-cast to the compute dtype.
    w1f = (w1 * params["scale1"][None, :]).astype(cdtype)                 # (C1, Cm)
    w2f = (w2 * params["scale2"][None, None, None, :]
           ).reshape(3, 3 * Cm, C2).astype(cdtype)                        # (3, 3Cm, C2)
    b1 = params["bias1"].reshape(1, Cm).astype(jnp.float32)
    b2 = params["bias2"].reshape(1, C2).astype(jnp.float32)

    kernel = functools.partial(_bottleneck_kernel, add=add, cdtype=cdtype)

    in_specs = [
        pl.BlockSpec((None, TH, W, C1), lambda n, i: (n, i, 0, 0)),
        pl.BlockSpec((None, 1, W, C1), lambda n, i: (n, i, 0, 0)),
        pl.BlockSpec((None, 1, W, C1), lambda n, i: (n, i, 0, 0)),
        pl.BlockSpec((C1, Cm), lambda n, i: (0, 0)),
        pl.BlockSpec((1, Cm), lambda n, i: (0, 0)),
        pl.BlockSpec((3, 3 * Cm, C2), lambda n, i: (0, 0, 0)),
        pl.BlockSpec((1, C2), lambda n, i: (0, 0)),
    ]
    out_spec = pl.BlockSpec((None, TH, W, C2), lambda n, i: (n, i, 0, 0))

    out = pl.pallas_call(
        kernel,
        out_shape=jax.ShapeDtypeStruct((N, H, W, C2), x.dtype),
        grid=(N, nRT),
        in_specs=in_specs,
        out_specs=out_spec,
        compiler_params=pltpu.CompilerParams(
            dimension_semantics=("parallel", "parallel"),
            vmem_limit_bytes=vmem_limit),
    )(x, halo_up, halo_dn, w1f, b1, w2f, b2)

    return jnp.transpose(out, (0, 3, 1, 2))                    # -> NCHW


# ----------------------------------------------------------------------------
# Pure-JAX reference (for correctness check)
# ----------------------------------------------------------------------------
def bottleneck_ref(x_nchw, params, add):
    x = jnp.transpose(x_nchw, (0, 2, 3, 1))
    dn = ("NHWC", "HWIO", "NHWC")
    w1 = params["w1"].reshape(1, 1, *params["w1"].shape)        # (1,1,C1,Cm)
    y = lax.conv_general_dilated(x, w1, (1, 1), "VALID", dimension_numbers=dn,
                                 precision=lax.Precision.HIGHEST)
    y = _swish(y * params["scale1"] + params["bias1"])
    y = lax.conv_general_dilated(y, params["w2"], (1, 1),
                                 ((1, 1), (1, 1)), dimension_numbers=dn,
                                 precision=lax.Precision.HIGHEST)
    y = _swish(y * params["scale2"] + params["bias2"])
    if add:
        y = y + x
    return jnp.transpose(y, (0, 3, 1, 2))


def make_params(key, c1, c2, e=0.5, eps=1e-5):
    c_ = int(c2 * e)
    keys = jax.random.split(key, 10)
    w1 = 0.2 * jax.random.normal(keys[0], (c1, c_), jnp.float32)          # 1x1
    w2 = 0.2 * jax.random.normal(keys[1], (3, 3, c_, c2), jnp.float32)    # HWIO

    def bn(kg, kb, km, kv, c):
        gamma = 1.0 + 0.1 * jax.random.normal(kg, (c,), jnp.float32)
        beta = 0.1 * jax.random.normal(kb, (c,), jnp.float32)
        mean = 0.1 * jax.random.normal(km, (c,), jnp.float32)
        var = 1.0 + 0.1 * jax.random.uniform(kv, (c,), jnp.float32)
        scale = gamma / jnp.sqrt(var + eps)
        bias = beta - mean * scale
        return scale, bias

    scale1, bias1 = bn(keys[2], keys[3], keys[4], keys[5], c_)
    scale2, bias2 = bn(keys[6], keys[7], keys[8], keys[9], c2)
    return {"w1": w1, "w2": w2, "scale1": scale1, "bias1": bias1,
            "scale2": scale2, "bias2": bias2}


if __name__ == "__main__":
    key = jax.random.PRNGKey(0)
    k_x, k_p = jax.random.split(key)

    N, C1, H, W = 2, 4, 16, 16
    C2 = 4                               # c1 == c2 and shortcut=True -> add

    x = jax.random.normal(k_x, (N, C1, H, W), jnp.float32)
    params = make_params(k_p, C1, C2)

    ref_add = jax.block_until_ready(bottleneck_ref(x, params, True))
    ref_noadd = jax.block_until_ready(bottleneck_ref(x, params, False))

    # f32 compute, 2 row tiles (exercises halo rows + top/bottom border masks)
    fwd = jax.jit(functools.partial(bottleneck_forward, add=True, row_tile=8,
                                    compute_dtype=jnp.float32))
    out = jax.block_until_ready(fwd(x, params))
    assert out.shape == (N, C2, H, W)
    assert jnp.allclose(out, ref_add, rtol=5e-4, atol=5e-4), "mismatch add/f32"

    # no-shortcut path, single row tile (both image borders in one tile)
    out2 = jax.block_until_ready(
        bottleneck_forward(x, params, add=False, row_tile=16,
                           compute_dtype=jnp.float32))
    assert jnp.allclose(out2, ref_noadd, rtol=5e-4, atol=5e-4), \
        "mismatch noadd/f32"

    # default path: bf16 MXU operands, auto row-tile selection
    out3 = jax.block_until_ready(bottleneck_forward(x, params, add=True))
    assert jnp.allclose(out3, ref_add, rtol=1e-1, atol=1e-1), "mismatch add/bf16"

    print("KERNEL_OK")
</pallas_src>

<mosaic_0001>
module attributes {stable_mosaic.version = 11 : i64} {
  func.func @_bottleneck_kernel(%arg0: i32, %arg1: i32, %arg2: memref<1x8x16x4xf32, #tpu.memory_space<vmem>>, %arg3: memref<1x1x16x4xf32, #tpu.memory_space<vmem>>, %arg4: memref<1x1x16x4xf32, #tpu.memory_space<vmem>>, %arg5: memref<4x2xf32, #tpu.memory_space<vmem>>, %arg6: memref<1x2xf32, #tpu.memory_space<vmem>>, %arg7: memref<3x6x4xf32, #tpu.memory_space<vmem>>, %arg8: memref<1x4xf32, #tpu.memory_space<vmem>>, %arg9: memref<1x8x16x4xf32, #tpu.memory_space<vmem>>) attributes {dimension_semantics = [#tpu.dimension_semantics<parallel>, #tpu.dimension_semantics<parallel>], iteration_bounds = array<i64: 2, 2>, scalar_prefetch = 0 : i64, scratch_operands = 0 : i64, tpu.core_type = #tpu.core_type<tc>, window_params = [{transform_indices = @transform_0, window_bounds = array<i64: 1, 8, 16, 4>}, {transform_indices = @transform_1, window_bounds = array<i64: 1, 1, 16, 4>}, {transform_indices = @transform_2, window_bounds = array<i64: 1, 1, 16, 4>}, {pipeline_mode = #tpu.pipeline_mode<synchronous>, transform_indices = @transform_3, window_bounds = array<i64: 4, 2>}, {pipeline_mode = #tpu.pipeline_mode<synchronous>, transform_indices = @transform_4, window_bounds = array<i64: 1, 2>}, {pipeline_mode = #tpu.pipeline_mode<synchronous>, transform_indices = @transform_5, window_bounds = array<i64: 3, 6, 4>}, {pipeline_mode = #tpu.pipeline_mode<synchronous>, transform_indices = @transform_6, window_bounds = array<i64: 1, 4>}, {transform_indices = @transform_7, window_bounds = array<i64: 1, 8, 16, 4>}]} {
    %c0 = arith.constant 0 : index
    %c0_0 = arith.constant 0 : index
    %c0_1 = arith.constant 0 : index
    %c0_2 = arith.constant 0 : index
    %0 = vector.load %arg3[%c0, %c0_0, %c0_1, %c0_2] : memref<1x1x16x4xf32, #tpu.memory_space<vmem>>, vector<1x1x16x4xf32>
    %1 = vector.shape_cast %0 : vector<1x1x16x4xf32> to vector<1x16x4xf32>
    %c0_3 = arith.constant 0 : index
    %c0_4 = arith.constant 0 : index
    %c0_5 = arith.constant 0 : index
    %c0_6 = arith.constant 0 : index
    %2 = vector.load %arg2[%c0_3, %c0_4, %c0_5, %c0_6] : memref<1x8x16x4xf32, #tpu.memory_space<vmem>>, vector<1x8x16x4xf32>
    %3 = vector.shape_cast %2 : vector<1x8x16x4xf32> to vector<8x16x4xf32>
    %c0_7 = arith.constant 0 : index
    %c0_8 = arith.constant 0 : index
    %c0_9 = arith.constant 0 : index
    %c0_10 = arith.constant 0 : index
    %4 = vector.load %arg4[%c0_7, %c0_8, %c0_9, %c0_10] : memref<1x1x16x4xf32, #tpu.memory_space<vmem>>, vector<1x1x16x4xf32>
    %5 = vector.shape_cast %4 : vector<1x1x16x4xf32> to vector<1x16x4xf32>
    %6 = tpu.concatenate %1, %3, %5 in 0 : vector<1x16x4xf32>, vector<8x16x4xf32>, vector<1x16x4xf32> -> vector<10x16x4xf32>
    %7 = vector.shape_cast %6 : vector<10x16x4xf32> to vector<160x4xf32>
    %c0_11 = arith.constant 0 : index
    %c0_12 = arith.constant 0 : index
    %8 = vector.load %arg5[%c0_11, %c0_12] : memref<4x2xf32, #tpu.memory_space<vmem>>, vector<4x2xf32>
    %cst = arith.constant dense<0.000000e+00> : vector<160x2xf32>
    %9 = tpu.matmul %7, %8, %cst {dimension_numbers = #tpu.dot_dimension_numbers<[1], [0], [0], [1], [0, 0, 1, 1], [], []>} : vector<160x4xf32>, vector<4x2xf32>, vector<160x2xf32> -> vector<160x2xf32>
    %c0_13 = arith.constant 0 : index
    %c0_14 = arith.constant 0 : index
    %10 = vector.load %arg6[%c0_13, %c0_14] : memref<1x2xf32, #tpu.memory_space<vmem>>, vector<1x2xf32>
    %11 = vector.broadcast %10 : vector<1x2xf32> to vector<160x2xf32>
    %12 = arith.addf %9, %11 : vector<160x2xf32>
    %13 = arith.negf %12 : vector<160x2xf32>
    %14 = math.exp %13 : vector<160x2xf32>
    %cst_15 = arith.constant 1.000000e+00 : f32
    %15 = vector.broadcast %cst_15 : f32 to vector<160x2xf32>
    %16 = arith.addf %15, %14 : vector<160x2xf32>
    %17 = arith.divf %15, %16 : vector<160x2xf32>
    %18 = arith.mulf %12, %17 : vector<160x2xf32>
    %19 = vector.shape_cast %18 : vector<160x2xf32> to vector<10x16x2xf32>
    %20 = tpu.iota {dimensions = array<i32: 0>} : vector<10x1x1xi32>
    %c0_i32 = arith.constant 0 : i32
    %21 = vector.broadcast %c0_i32 : i32 to vector<10x1x1xi32>
    %22 = arith.cmpi eq, %20, %21 : vector<10x1x1xi32>
    %c0_i32_16 = arith.constant 0 : i32
    %23 = arith.cmpi eq, %arg1, %c0_i32_16 : i32
    %24 = vector.broadcast %23 : i1 to vector<10x1x1xi1>
    %25 = arith.andi %22, %24 : vector<10x1x1xi1>
    %c9_i32 = arith.constant 9 : i32
    %26 = vector.broadcast %c9_i32 : i32 to vector<10x1x1xi32>
    %27 = arith.cmpi eq, %20, %26 : vector<10x1x1xi32>
    %c1_i32 = arith.constant 1 : i32
    %28 = arith.cmpi eq, %arg1, %c1_i32 : i32
    %29 = vector.broadcast %28 : i1 to vector<10x1x1xi1>
    %30 = arith.andi %27, %29 : vector<10x1x1xi1>
    %31 = arith.ori %25, %30 : vector<10x1x1xi1>
    %cst_17 = arith.constant 0.000000e+00 : f32
    %32 = vector.shape_cast %31 : vector<10x1x1xi1> to vector<10x1x1xi1>
    %33 = vector.broadcast %32 : vector<10x1x1xi1> to vector<10x16x2xi1>
    %34 = vector.broadcast %cst_17 : f32 to vector<10x16x2xf32>
    %35 = arith.select %33, %34, %19 : vector<10x16x2xi1>, vector<10x16x2xf32>
    %cst_18 = arith.constant 0.000000e+00 : f32
    %36 = vector.broadcast %cst_18 : f32 to vector<10x1x2xf32>
    %37 = tpu.concatenate %36, %35, %36 in 1 : vector<10x1x2xf32>, vector<10x16x2xf32>, vector<10x1x2xf32> -> vector<10x18x2xf32>
    %38 = vector.extract_strided_slice %37 {offsets = [0, 0, 0], sizes = [10, 16, 2], strides = [1, 1, 1]} : vector<10x18x2xf32> to vector<10x16x2xf32>
    %39 = vector.extract_strided_slice %37 {offsets = [0, 1, 0], sizes = [10, 16, 2], strides = [1, 1, 1]} : vector<10x18x2xf32> to vector<10x16x2xf32>
    %40 = vector.extract_strided_slice %37 {offsets = [0, 2, 0], sizes = [10, 16, 2], strides = [1, 1, 1]} : vector<10x18x2xf32> to vector<10x16x2xf32>
    %41 = tpu.concatenate %38, %39, %40 in 2 : vector<10x16x2xf32>, vector<10x16x2xf32>, vector<10x16x2xf32> -> vector<10x16x6xf32>
    %42 = vector.extract_strided_slice %41 {offsets = [0, 0, 0], sizes = [8, 16, 6], strides = [1, 1, 1]} : vector<10x16x6xf32> to vector<8x16x6xf32>
    %43 = vector.shape_cast %42 : vector<8x16x6xf32> to vector<128x6xf32>
    %c0_19 = arith.constant 0 : index
    %c0_20 = arith.constant 0 : index
    %c0_21 = arith.constant 0 : index
    %44 = vector.load %arg7[%c0_19, %c0_20, %c0_21] : memref<3x6x4xf32, #tpu.memory_space<vmem>>, vector<1x6x4xf32>
    %45 = vector.shape_cast %44 : vector<1x6x4xf32> to vector<6x4xf32>
    %cst_22 = arith.constant dense<0.000000e+00> : vector<128x4xf32>
    %46 = tpu.matmul %43, %45, %cst_22 {dimension_numbers = #tpu.dot_dimension_numbers<[1], [0], [0], [1], [0, 0, 1, 1], [], []>} : vector<128x6xf32>, vector<6x4xf32>, vector<128x4xf32> -> vector<128x4xf32>
    %47 = vector.extract_strided_slice %41 {offsets = [1, 0, 0], sizes = [8, 16, 6], strides = [1, 1, 1]} : vector<10x16x6xf32> to vector<8x16x6xf32>
    %48 = vector.shape_cast %47 : vector<8x16x6xf32> to vector<128x6xf32>
    %c1 = arith.constant 1 : index
    %c0_23 = arith.constant 0 : index
    %c0_24 = arith.constant 0 : index
    %49 = vector.load %arg7[%c1, %c0_23, %c0_24] : memref<3x6x4xf32, #tpu.memory_space<vmem>>, vector<1x6x4xf32>
    %50 = vector.shape_cast %49 : vector<1x6x4xf32> to vector<6x4xf32>
    %cst_25 = arith.constant dense<0.000000e+00> : vector<128x4xf32>
    %51 = tpu.matmul %48, %50, %cst_25 {dimension_numbers = #tpu.dot_dimension_numbers<[1], [0], [0], [1], [0, 0, 1, 1], [], []>} : vector<128x6xf32>, vector<6x4xf32>, vector<128x4xf32> -> vector<128x4xf32>
    %52 = arith.addf %46, %51 : vector<128x4xf32>
    %53 = vector.extract_strided_slice %41 {offsets = [2, 0, 0], sizes = [8, 16, 6], strides = [1, 1, 1]} : vector<10x16x6xf32> to vector<8x16x6xf32>
    %54 = vector.shape_cast %53 : vector<8x16x6xf32> to vector<128x6xf32>
    %c2 = arith.constant 2 : index
    %c0_26 = arith.constant 0 : index
    %c0_27 = arith.constant 0 : index
    %55 = vector.load %arg7[%c2, %c0_26, %c0_27] : memref<3x6x4xf32, #tpu.memory_space<vmem>>, vector<1x6x4xf32>
    %56 = vector.shape_cast %55 : vector<1x6x4xf32> to vector<6x4xf32>
    %cst_28 = arith.constant dense<0.000000e+00> : vector<128x4xf32>
    %57 = tpu.matmul %54, %56, %cst_28 {dimension_numbers = #tpu.dot_dimension_numbers<[1], [0], [0], [1], [0, 0, 1, 1], [], []>} : vector<128x6xf32>, vector<6x4xf32>, vector<128x4xf32> -> vector<128x4xf32>
    %58 = arith.addf %52, %57 : vector<128x4xf32>
    %c0_29 = arith.constant 0 : index
    %c0_30 = arith.constant 0 : index
    %59 = vector.load %arg8[%c0_29, %c0_30] : memref<1x4xf32, #tpu.memory_space<vmem>>, vector<1x4xf32>
    %60 = vector.broadcast %59 : vector<1x4xf32> to vector<128x4xf32>
    %61 = arith.addf %58, %60 : vector<128x4xf32>
    %62 = arith.negf %61 : vector<128x4xf32>
    %63 = math.exp %62 : vector<128x4xf32>
    %cst_31 = arith.constant 1.000000e+00 : f32
    %64 = vector.broadcast %cst_31 : f32 to vector<128x4xf32>
    %65 = arith.addf %64, %63 : vector<128x4xf32>
    %66 = arith.divf %64, %65 : vector<128x4xf32>
    %67 = arith.mulf %61, %66 : vector<128x4xf32>
    %c0_32 = arith.constant 0 : index
    %c0_33 = arith.constant 0 : index
    %c0_34 = arith.constant 0 : index
    %c0_35 = arith.constant 0 : index
    %68 = vector.load %arg2[%c0_32, %c0_33, %c0_34, %c0_35] : memref<1x8x16x4xf32, #tpu.memory_space<vmem>>, vector<1x8x16x4xf32>
    %69 = vector.shape_cast %68 : vector<1x8x16x4xf32> to vector<8x16x4xf32>
    %70 = vector.shape_cast %69 : vector<8x16x4xf32> to vector<128x4xf32>
    %71 = arith.addf %67, %70 : vector<128x4xf32>
    %72 = vector.shape_cast %71 : vector<128x4xf32> to vector<8x16x4xf32>
    %c0_36 = arith.constant 0 : index
    %c0_37 = arith.constant 0 : index
    %c0_38 = arith.constant 0 : index
    %c0_39 = arith.constant 0 : index
    %73 = vector.load %arg9[%c0_36, %c0_37, %c0_38, %c0_39] : memref<1x8x16x4xf32, #tpu.memory_space<vmem>>, vector<1x8x16x4xf32>
    %74 = vector.shape_cast %73 : vector<1x8x16x4xf32> to vector<8x16x4xf32>
    %75 = vector.shape_cast %72 : vector<8x16x4xf32> to vector<1x8x16x4xf32>
    tpu.vector_store %arg9[%c0_36, %c0_37, %c0_38, %c0_39], %75 {strides = array<i32>} : memref<1x8x16x4xf32, #tpu.memory_space<vmem>>, vector<1x8x16x4xf32>,
    return
  }
  func.func @transform_0(%arg0: i32, %arg1: i32) -> (i32, i32, i32, i32) {
    %c0_i32 = arith.constant 0 : i32
    %c0_i32_0 = arith.constant 0 : i32
    %c0_i32_1 = arith.constant 0 : i32
    return %arg0, %arg1, %c0_i32, %c0_i32_0 : i32, i32, i32, i32
  }
  func.func @transform_1(%arg0: i32, %arg1: i32) -> (i32, i32, i32, i32) {
    %c0_i32 = arith.constant 0 : i32
    %c0_i32_0 = arith.constant 0 : i32
    %c0_i32_1 = arith.constant 0 : i32
    return %arg0, %arg1, %c0_i32, %c0_i32_0 : i32, i32, i32, i32
  }
  func.func @transform_2(%arg0: i32, %arg1: i32) -> (i32, i32, i32, i32) {
    %c0_i32 = arith.constant 0 : i32
    %c0_i32_0 = arith.constant 0 : i32
    %c0_i32_1 = arith.constant 0 : i32
    return %arg0, %arg1, %c0_i32, %c0_i32_0 : i32, i32, i32, i32
  }
  func.func @transform_3(%arg0: i32, %arg1: i32) -> (i32, i32) {
    %c0_i32 = arith.constant 0 : i32
    %c0_i32_0 = arith.constant 0 : i32
    %c0_i32_1 = arith.constant 0 : i32
    return %c0_i32, %c0_i32_0 : i32, i32
  }
  func.func @transform_4(%arg0: i32, %arg1: i32) -> (i32, i32) {
    %c0_i32 = arith.constant 0 : i32
    %c0_i32_0 = arith.constant 0 : i32
    %c0_i32_1 = arith.constant 0 : i32
    return %c0_i32, %c0_i32_0 : i32, i32
  }
  func.func @transform_5(%arg0: i32, %arg1: i32) -> (i32, i32, i32) {
    %c0_i32 = arith.constant 0 : i32
    %c0_i32_0 = arith.constant 0 : i32
    %c0_i32_1 = arith.constant 0 : i32
    %c0_i32_2 = arith.constant 0 : i32
    return %c0_i32, %c0_i32_0, %c0_i32_1 : i32, i32, i32
  }
  func.func @transform_6(%arg0: i32, %arg1: i32) -> (i32, i32) {
    %c0_i32 = arith.constant 0 : i32
    %c0_i32_0 = arith.constant 0 : i32
    %c0_i32_1 = arith.constant 0 : i32
    return %c0_i32, %c0_i32_0 : i32, i32
  }
  func.func @transform_7(%arg0: i32, %arg1: i32) -> (i32, i32, i32, i32) {
    %c0_i32 = arith.constant 0 : i32
    %c0_i32_0 = arith.constant 0 : i32
    %c0_i32_1 = arith.constant 0 : i32
    return %arg0, %arg1, %c0_i32, %c0_i32_0 : i32, i32, i32, i32
  }
}

</mosaic_0001>

<llo_original>
// kernel: bottleneck_forward.1
$region0: #{bottleneck_forward.1}
  #allocation0 [shape = 'u32[]', space=smem, size = 0x4, offset = 0x4, fixed_abs, tag = 'smem constant byte address 0x4 - core index']
  #allocation1 [shape = 'u32[144,128]{1,0:T(1,128)}', space=vmem, size = 0x12000, scoped, tag = 'internal scratch']
  %s0 = inlined_call_operand.vmem [shape: f32[2,16,16,4], index: 0, kind: input, shape index: {}]
  %s1 = inlined_call_operand.vmem [shape: f32[2,2,16,4], index: 1, kind: input, shape index: {}]
  %s2 = inlined_call_operand.vmem [shape: f32[2,2,16,4], index: 2, kind: input, shape index: {}]
  %s3 = inlined_call_operand.vmem [shape: f32[4,2], index: 3, kind: input, shape index: {}]
  %s4 = inlined_call_operand.vmem [shape: f32[1,2], index: 4, kind: input, shape index: {}]
  %s5 = inlined_call_operand.vmem [shape: f32[3,6,4], index: 5, kind: input, shape index: {}]
  %s6 = inlined_call_operand.vmem [shape: f32[1,4], index: 6, kind: input, shape index: {}]
  %s7 = inlined_call_operand.vmem [shape: f32[2,16,16,4], index: 7, kind: output, shape index: {}]
  %s8 = sld [smem:[#allocation0]]
  $region61: #{bottleneck_forward.1} parent=0
    _
  %s10 = ssub.s32 1, %s8
  %s11 = scalar_select 0, %s10, %s8
  loop: start=0, step=1, limit=6
  $region2: #{bottleneck_forward.1} parent=0 // loop_pre_header
    _
  $region3: #{bottleneck_forward.1} parent=0 // loop_header
    %s13 = sphi 0, %s17
    %p14 = scmp.ge.s32.totalorder %s13, 6
    %s20 = sphi 0, %s32
    %s21 = sphi 0, %s28
    %s22 = sphi 0, %s20
    %s23 = sphi 0, %s21
    %s24 = sphi 0, %s22
    %s25 = sphi 0, %s23
    %s37 = sphi 0, %s39
    %s40 = sphi 0, %s37
    %s41 = sphi 0, %s40
    %s57 = sphi 0, %s41
    %s65 = sphi 0, %s67
    %s68 = sphi 0, %s65
    %s69 = sphi 0, %s68
    %s85 = sphi 0, %s69
    %s93 = sphi 0, %s95
    %s96 = sphi 0, %s93
    %s97 = sphi 0, %s96
    %s113 = sphi 0, %s97
    %s117 = sphi 0, %s117
    %s119 = sphi 0, %s117
    %s120 = sphi 0, %s119
    %s134 = sphi 0, %s120
    %s138 = sphi 0, %s138
    %s140 = sphi 0, %s138
    %s141 = sphi 0, %s140
    %s155 = sphi 0, %s141
    %s159 = sphi 0, %s159
    %s161 = sphi 0, %s159
    %s162 = sphi 0, %s161
    %s176 = sphi 0, %s162
    %s180 = sphi 0, %s180
    %s182 = sphi 0, %s180
    %s183 = sphi 0, %s182
    %s197 = sphi 0, %s183
    %s205 = sphi 0, %s207
    %s208 = sphi 0, %s205
    %s209 = sphi 0, %s208
    %s225 = sphi 0, %s209
  $region4: #{bottleneck_forward.1} parent=0 // loop_header_branch
    %16 = sbr.rel (%p14) target = $region8
  $region5: #{bottleneck_forward.1} parent=0 // loop_body
    %s18 = ssub.s32 %s13, 1
    %s19 = ssub.s32 %s13, 2
    %s26 = sadd.s32 1, %s21
    %p27 = scmp.ge.s32.totalorder %s26, 2
    %s28 = scalar_select %p27, 0, %s26
    %s29 = sadd.s32 1, %s20
    %s30 = scalar_select %p27, %s29, %s20
    %p31 = scmp.ge.s32.totalorder %s30, 2
    %s32 = scalar_select %p31, 0, %s30
    %s33 = ssub.s32 %s20, %s32
    %s34 = ssub.s32 %s21, %s28
    %s35 = sor.u32 %s33, %s34
    %p36 = scmp.eq.s32.totalorder %s35, 0
    %s38 = sadd.s32 %s37, 1
    %s39 = scalar_select %p36, %s37, %s38
    %p42 = pneg %p36
    %p43 = scmp.eq.s32.totalorder %s13, 3
    %p44 = por %p42, %p43
    %p45 = scmp.ne.s32.totalorder %s37, %s40
    %p46 = scmp.eq.s32.totalorder %s13, 0
    %p47 = por %p45, %p46
    %p48 = scmp.ne.s32.totalorder %s37, %s40
    %p49 = scmp.eq.s32.totalorder %s18, 3
    %p50 = por %p48, %p49
    %p51 = scmp.ne.s32.totalorder %s40, %s41
    %p52 = scmp.eq.s32.totalorder %s18, 0
    %p53 = por %p51, %p52
    %p54 = scmp.ne.s32.totalorder %s40, %s41
    %p55 = scmp.eq.s32.totalorder %s19, 3
    %p56 = por %p54, %p55
    %p58 = scmp.ne.s32.totalorder %s41, %s57
    %p59 = scmp.eq.s32.totalorder %s19, 0
    %p60 = por %p58, %p59
    %s61 = ssub.s32 %s20, %s32
    %s62 = ssub.s32 %s21, %s28
    %s63 = sor.u32 %s61, %s62
    %p64 = scmp.eq.s32.totalorder %s63, 0
    %s66 = sadd.s32 %s65, 1
    %s67 = scalar_select %p64, %s65, %s66
    %p70 = pneg %p64
    %p71 = scmp.eq.s32.totalorder %s13, 3
    %p72 = por %p70, %p71
    %p73 = scmp.ne.s32.totalorder %s65, %s68
    %p74 = scmp.eq.s32.totalorder %s13, 0
    %p75 = por %p73, %p74
    %p76 = scmp.ne.s32.totalorder %s65, %s68
    %p77 = scmp.eq.s32.totalorder %s18, 3
    %p78 = por %p76, %p77
    %p79 = scmp.ne.s32.totalorder %s68, %s69
    %p80 = scmp.eq.s32.totalorder %s18, 0
    %p81 = por %p79, %p80
    %p82 = scmp.ne.s32.totalorder %s68, %s69
    %p83 = scmp.eq.s32.totalorder %s19, 3
    %p84 = por %p82, %p83
    %p86 = scmp.ne.s32.totalorder %s69, %s85
    %p87 = scmp.eq.s32.totalorder %s19, 0
    %p88 = por %p86, %p87
    %s89 = ssub.s32 %s20, %s32
    %s90 = ssub.s32 %s21, %s28
    %s91 = sor.u32 %s89, %s90
    %p92 = scmp.eq.s32.totalorder %s91, 0
    %s94 = sadd.s32 %s93, 1
    %s95 = scalar_select %p92, %s93, %s94
    %p98 = pneg %p92
    %p99 = scmp.eq.s32.totalorder %s13, 3
    %p100 = por %p98, %p99
    %p101 = scmp.ne.s32.totalorder %s93, %s96
    %p102 = scmp.eq.s32.totalorder %s13, 0
    %p103 = por %p101, %p102
    %p104 = scmp.ne.s32.totalorder %s93, %s96
    %p105 = scmp.eq.s32.totalorder %s18, 3
    %p106 = por %p104, %p105
    %p107 = scmp.ne.s32.totalorder %s96, %s97
    %p108 = scmp.eq.s32.totalorder %s18, 0
    %p109 = por %p107, %p108
    %p110 = scmp.ne.s32.totalorder %s96, %s97
    %p111 = scmp.eq.s32.totalorder %s19, 3
    %p112 = por %p110, %p111
    %p114 = scmp.ne.s32.totalorder %s97, %s113
    %p115 = scmp.eq.s32.totalorder %s19, 0
    %p116 = por %p114, %p115
    %s118 = sadd.s32 %s117, 1
    %p121 = scmp.eq.s32.totalorder %s13, 3
    %p122 = scmp.ne.s32.totalorder %s117, %s119
    %p123 = scmp.eq.s32.totalorder %s13, 0
    %p124 = por %p122, %p123
    %p125 = scmp.ne.s32.totalorder %s117, %s119
    %p126 = scmp.eq.s32.totalorder %s18, 3
    %p127 = por %p125, %p126
    %p128 = scmp.ne.s32.totalorder %s119, %s120
    %p129 = scmp.eq.s32.totalorder %s18, 0
    %p130 = por %p128, %p129
    %p131 = scmp.ne.s32.totalorder %s119, %s120
    %p132 = scmp.eq.s32.totalorder %s19, 3
    %p133 = por %p131, %p132
    %p135 = scmp.ne.s32.totalorder %s120, %s134
    %p136 = scmp.eq.s32.totalorder %s19, 0
    %p137 = por %p135, %p136
    %s139 = sadd.s32 %s138, 1
    %p142 = scmp.eq.s32.totalorder %s13, 3
    %p143 = scmp.ne.s32.totalorder %s138, %s140
    %p144 = scmp.eq.s32.totalorder %s13, 0
    %p145 = por %p143, %p144
    %p146 = scmp.ne.s32.totalorder %s138, %s140
    %p147 = scmp.eq.s32.totalorder %s18, 3
    %p148 = por %p146, %p147
    %p149 = scmp.ne.s32.totalorder %s140, %s141
    %p150 = scmp.eq.s32.totalorder %s18, 0
    %p151 = por %p149, %p150
    %p152 = scmp.ne.s32.totalorder %s140, %s141
    %p153 = scmp.eq.s32.totalorder %s19, 3
    %p154 = por %p152, %p153
    %p156 = scmp.ne.s32.totalorder %s141, %s155
    %p157 = scmp.eq.s32.totalorder %s19, 0
    %p158 = por %p156, %p157
    %s160 = sadd.s32 %s159, 1
    %p163 = scmp.eq.s32.totalorder %s13, 3
    %p164 = scmp.ne.s32.totalorder %s159, %s161
    %p165 = scmp.eq.s32.totalorder %s13, 0
    %p166 = por %p164, %p165
    %p167 = scmp.ne.s32.totalorder %s159, %s161
    %p168 = scmp.eq.s32.totalorder %s18, 3
    %p169 = por %p167, %p168
    %p170 = scmp.ne.s32.totalorder %s161, %s162
    %p171 = scmp.eq.s32.totalorder %s18, 0
    %p172 = por %p170, %p171
    %p173 = scmp.ne.s32.totalorder %s161, %s162
    %p174 = scmp.eq.s32.totalorder %s19, 3
    %p175 = por %p173, %p174
    %p177 = scmp.ne.s32.totalorder %s162, %s176
    %p178 = scmp.eq.s32.totalorder %s19, 0
    %p179 = por %p177, %p178
    %s181 = sadd.s32 %s180, 1
    %p184 = scmp.eq.s32.totalorder %s13, 3
    %p185 = scmp.ne.s32.totalorder %s180, %s182
    %p186 = scmp.eq.s32.totalorder %s13, 0
    %p187 = por %p185, %p186
    %p188 = scmp.ne.s32.totalorder %s180, %s182
    %p189 = scmp.eq.s32.totalorder %s18, 3
    %p190 = por %p188, %p189
    %p191 = scmp.ne.s32.totalorder %s182, %s183
    %p192 = scmp.eq.s32.totalorder %s18, 0
    %p193 = por %p191, %p192
    %p194 = scmp.ne.s32.totalorder %s182, %s183
    %p195 = scmp.eq.s32.totalorder %s19, 3
    %p196 = por %p194, %p195
    %p198 = scmp.ne.s32.totalorder %s183, %s197
    %p199 = scmp.eq.s32.totalorder %s19, 0
    %p200 = por %p198, %p199
    %s201 = ssub.s32 %s20, %s32
    %s202 = ssub.s32 %s21, %s28
    %s203 = sor.u32 %s201, %s202
    %p204 = scmp.eq.s32.totalorder %s203, 0
    %s206 = sadd.s32 %s205, 1
    %s207 = scalar_select %p204, %s205, %s206
    %p210 = pneg %p204
    %p211 = scmp.eq.s32.totalorder %s13, 3
    %p212 = por %p210, %p211
    %p213 = scmp.ne.s32.totalorder %s205, %s208
    %p214 = scmp.eq.s32.totalorder %s13, 0
    %p215 = por %p213, %p214
    %p216 = scmp.ne.s32.totalorder %s205, %s208
    %p217 = scmp.eq.s32.totalorder %s18, 3
    %p218 = por %p216, %p217
    %p219 = scmp.ne.s32.totalorder %s208, %s209
    %p220 = scmp.eq.s32.totalorder %s18, 0
    %p221 = por %p219, %p220
    %p222 = scmp.ne.s32.totalorder %s208, %s209
    %p223 = scmp.eq.s32.totalorder %s19, 3
    %p224 = por %p222, %p223
    %p226 = scmp.ne.s32.totalorder %s209, %s225
    %p227 = scmp.eq.s32.totalorder %s19, 0
    %p228 = por %p226, %p227
    %p229 = scmp.le.s32.totalorder 1, %s13
    %p230 = scmp.lt.s32.totalorder %s13, 5
    %p231 = pnand %p229, %p230
    %p232 = pneg %p231
    // Predicated region
    $region9: #{bottleneck_forward.1} parent=5 // pred_check
      _
    $region10: #{bottleneck_forward.1} parent=5 // pred_check_branch
      %234 = sbr.rel (%p231) target = $region12
    $region11: #{bottleneck_forward.1} parent=5 // pred_region
      %s235 = ssub.s32 %s13, 1
      // Predicated region
      $region13: #{bottleneck_forward.1} parent=11 // pred_check
        %p236 = pneg %p130
      $region14: #{bottleneck_forward.1} parent=11 // pred_check_branch
        %238 = sbr.rel (%p236) target = $region16
      $region15: #{bottleneck_forward.1} parent=11 // pred_region
        _
      $region16: #{bottleneck_forward.1} parent=11 // pred_fallthru
        _
      // Predicated region
      $region17: #{bottleneck_forward.1} parent=11 // pred_check
        %p239 = pneg %p151
      $region18: #{bottleneck_forward.1} parent=11 // pred_check_branch
        %241 = sbr.rel (%p239) target = $region20
      $region19: #{bottleneck_forward.1} parent=11 // pred_region
        _
      $region20: #{bottleneck_forward.1} parent=11 // pred_fallthru
        _
      // Predicated region
      $region21: #{bottleneck_forward.1} parent=11 // pred_check
        %p242 = pneg %p172
      $region22: #{bottleneck_forward.1} parent=11 // pred_check_branch
        %244 = sbr.rel (%p242) target = $region24
      $region23: #{bottleneck_forward.1} parent=11 // pred_region
        _
      $region24: #{bottleneck_forward.1} parent=11 // pred_fallthru
        _
      // Predicated region
      $region25: #{bottleneck_forward.1} parent=11 // pred_check
        %p245 = pneg %p193
      $region26: #{bottleneck_forward.1} parent=11 // pred_check_branch
        %247 = sbr.rel (%p245) target = $region28
      $region27: #{bottleneck_forward.1} parent=11 // pred_region
        _
      $region28: #{bottleneck_forward.1} parent=11 // pred_fallthru
        _
    $region12: #{bottleneck_forward.1} parent=5 // pred_fallthru
      _
    %p248 = scmp.lt.s32.totalorder %s13, 4
    // Predicated region
    $region29: #{bottleneck_forward.1} parent=5 // pred_check
      %p249 = pneg %p248
    $region30: #{bottleneck_forward.1} parent=5 // pred_check_branch
      %251 = sbr.rel (%p249) target = $region32
    $region31: #{bottleneck_forward.1} parent=5 // pred_region
      // Predicated region
      $region33: #{bottleneck_forward.1} parent=31 // pred_check
        %p252 = pneg %p47
      $region34: #{bottleneck_forward.1} parent=31 // pred_check_branch
        %254 = sbr.rel (%p252) target = $region36
      $region35: #{bottleneck_forward.1} parent=31 // pred_region
        %s255 = smul.u32 8, %s21
        %p256 = scmp.lt.s32.totalorder %s20, 1
        %s257 = scalar_select %p256, %s20, 1
        %p258 = scmp.lt.s32.totalorder %s255, 15
        %s259 = scalar_select %p258, %s255, 15
        %s260 = smul.addr %s259, 2
        %s261 = smul.addr %s257, 32
        %s262 = sadd.s32 %s260, %s261
        %s263 = smul.addr %s262, 8
        %s264 = scalar_lea.vmem %s0, %s263
        %s265 = smul.u32 8, %s21
      $region36: #{bottleneck_forward.1} parent=31 // pred_fallthru
        _
      // Predicated region
      $region37: #{bottleneck_forward.1} parent=31 // pred_check
        %p266 = pneg %p75
      $region38: #{bottleneck_forward.1} parent=31 // pred_check_branch
        %268 = sbr.rel (%p266) target = $region40
      $region39: #{bottleneck_forward.1} parent=31 // pred_region
        %p269 = scmp.lt.s32.totalorder %s20, 1
        %s270 = scalar_select %p269, %s20, 1
        %p271 = scmp.lt.s32.totalorder %s21, 1
        %s272 = scalar_select %p271, %s21, 1
        %s273 = smul.addr %s272, 2
        %s274 = smul.addr %s270, 4
        %s275 = sadd.s32 %s273, %s274
        %s276 = smul.addr %s275, 8
        %s277 = scalar_lea.vmem %s1, %s276
      $region40: #{bottleneck_forward.1} parent=31 // pred_fallthru
        _
      // Predicated region
      $region41: #{bottleneck_forward.1} parent=31 // pred_check
        %p278 = pneg %p103
      $region42: #{bottleneck_forward.1} parent=31 // pred_check_branch
        %280 = sbr.rel (%p278) target = $region44
      $region43: #{bottleneck_forward.1} parent=31 // pred_region
        %p281 = scmp.lt.s32.totalorder %s20, 1
        %s282 = scalar_select %p281, %s20, 1
        %p283 = scmp.lt.s32.totalorder %s21, 1
        %s284 = scalar_select %p283, %s21, 1
        %s285 = smul.addr %s284, 2
        %s286 = smul.addr %s282, 4
        %s287 = sadd.s32 %s285, %s286
        %s288 = smul.addr %s287, 8
        %s289 = scalar_lea.vmem %s2, %s288
      $region44: #{bottleneck_forward.1} parent=31 // pred_fallthru
        _
    $region32: #{bottleneck_forward.1} parent=5 // pred_fallthru
      _
    %p290 = scmp.le.s32.totalorder 1, %s13
    %p291 = scmp.lt.s32.totalorder %s13, 5
    %p292 = pnand %p290, %p291
    %p293 = pneg %p292
    // Predicated region
    $region45: #{bottleneck_forward.1} parent=5 // pred_check
      _
    $region46: #{bottleneck_forward.1} parent=5 // pred_check_branch
      %295 = sbr.rel (%p292) target = $region48
    $region47: #{bottleneck_forward.1} parent=5 // pred_region
      %s296 = ssub.s32 %s13, 1
      %s297 = smul.u32 8, %s23
      %p298 = scmp.lt.s32.totalorder %s22, 1
      %s299 = scalar_select %p298, %s22, 1
      %p300 = scmp.lt.s32.totalorder %s297, 15
      %s301 = scalar_select %p300, %s297, 15
      %s302 = smul.addr %s301, 2
      %s303 = smul.addr %s299, 32
      %s304 = sadd.s32 %s302, %s303
      %s305 = smul.addr %s304, 8
      %s306 = scalar_lea.vmem %s0, %s305
      %p307 = pneg %p53
      %p308 = pneg %p50
      %p309 = scmp.lt.s32.totalorder %s22, 1
      %s310 = scalar_select %p309, %s22, 1
      %p311 = scmp.lt.s32.totalorder %s23, 1
      %s312 = scalar_select %p311, %s23, 1
      %s313 = smul.addr %s312, 2
      %s314 = smul.addr %s310, 4
      %s315 = sadd.s32 %s313, %s314
      %s316 = smul.addr %s315, 8
      %s317 = scalar_lea.vmem %s1, %s316
      %p318 = pneg %p81
      %p319 = pneg %p78
      %p320 = scmp.lt.s32.totalorder %s22, 1
      %s321 = scalar_select %p320, %s22, 1
      %p322 = scmp.lt.s32.totalorder %s23, 1
      %s323 = scalar_select %p322, %s23, 1
      %s324 = smul.addr %s323, 2
      %s325 = smul.addr %s321, 4
      %s326 = sadd.s32 %s324, %s325
      %s327 = smul.addr %s326, 8
      %s328 = scalar_lea.vmem %s2, %s327
      %p329 = pneg %p109
      %p330 = pneg %p106
      %p331 = pneg %p130
      %p332 = pneg %p127
      %p333 = pneg %p151
      %p334 = pneg %p148
      %p335 = pneg %p172
      %p336 = pneg %p169
      %p337 = pneg %p193
      %p338 = pneg %p190
      %p339 = pneg %p221
      %p340 = pneg %p218
      %s341 = smul.u32 8, %s23
      %p342 = scmp.lt.s32.totalorder %s22, 1
      %s343 = scalar_select %p342, %s22, 1
      %p344 = scmp.lt.s32.totalorder %s341, 15
      %s345 = scalar_select %p344, %s341, 15
      %s346 = smul.addr %s345, 2
      %s347 = smul.addr %s343, 32
      %s348 = sadd.s32 %s346, %s347
      %s349 = smul.addr %s348, 8
      %s350 = scalar_lea.vmem %s7, %s349
      %s351 = smul.u32 8, %s23
      %p352 = scmp.lt.s32.totalorder %s22, 1
      %s353 = scalar_select %p352, %s22, 1
      %p354 = scmp.lt.s32.totalorder %s351, 15
      %s355 = scalar_select %p354, %s351, 15
      %s356 = smul.addr %s355, 2
      %s357 = smul.addr %s353, 32
      %s358 = sadd.s32 %s356, %s357
      %s359 = smul.addr %s358, 8
      %s360 = scalar_lea.vmem %s0, %s359
      %s361 = smul.u32 8, %s23
      %p362 = scmp.lt.s32.totalorder %s22, 1
      %s363 = scalar_select %p362, %s22, 1
      %p364 = scmp.lt.s32.totalorder %s23, 1
      %s365 = scalar_select %p364, %s23, 1
      %s366 = smul.addr %s365, 2
      %s367 = smul.addr %s363, 4
      %s368 = sadd.s32 %s366, %s367
      %s369 = smul.addr %s368, 8
      %s370 = scalar_lea.vmem %s1, %s369
      %p371 = scmp.lt.s32.totalorder %s22, 1
      %s372 = scalar_select %p371, %s22, 1
      %p373 = scmp.lt.s32.totalorder %s23, 1
      %s374 = scalar_select %p373, %s23, 1
      %s375 = smul.addr %s374, 2
      %s376 = smul.addr %s372, 4
      %s377 = sadd.s32 %s375, %s376
      %s378 = smul.addr %s377, 8
      %s379 = scalar_lea.vmem %s2, %s378
      %s380 = smul.u32 8, %s23
      %p381 = scmp.lt.s32.totalorder %s22, 1
      %s382 = scalar_select %p381, %s22, 1
      %p383 = scmp.lt.s32.totalorder %s380, 15
      %s384 = scalar_select %p383, %s380, 15
      %s385 = smul.addr %s384, 2
      %s386 = smul.addr %s382, 32
      %s387 = sadd.s32 %s385, %s386
      %s388 = smul.addr %s387, 8
      %s389 = scalar_lea.vmem %s7, %s388
      %s390 = smul.u32 8, %s23
      %v391 = vld [vmem:[%s370] sm:$0xff]
      %v392 = vld [vmem:[%s370 + $0x8] sm:$0xff]
      %v393 = vld [vmem:[%s360] sm:$0xff]
      %v394 = vld [vmem:[%s360 + $0x8] sm:$0xff]
      %v395 = vld [vmem:[%s360 + $0x10] sm:$0xff]
      %v396 = vld [vmem:[%s360 + $0x18] sm:$0xff]
      %v397 = vld [vmem:[%s360 + $0x20] sm:$0xff]
      %v398 = vld [vmem:[%s360 + $0x28] sm:$0xff]
      %v399 = vld [vmem:[%s360 + $0x30] sm:$0xff]
      %v400 = vld [vmem:[%s360 + $0x38] sm:$0xff]
      %v401 = vld [vmem:[%s360 + $0x40] sm:$0xff]
      %v402 = vld [vmem:[%s360 + $0x48] sm:$0xff]
      %v403 = vld [vmem:[%s360 + $0x50] sm:$0xff]
      %v404 = vld [vmem:[%s360 + $0x58] sm:$0xff]
      %v405 = vld [vmem:[%s360 + $0x60] sm:$0xff]
      %v406 = vld [vmem:[%s360 + $0x68] sm:$0xff]
      %v407 = vld [vmem:[%s360 + $0x70] sm:$0xff]
      %v408 = vld [vmem:[%s360 + $0x78] sm:$0xff]
      %v409 = vld [vmem:[%s379] sm:$0xff]
      %v410 = vld [vmem:[%s379 + $0x8] sm:$0xff]
      %v411 = vld [vmem:[%s3] sm:$0xf]
      %v412 = vld [vmem:[%s4] sm:$0x1]
      %v414 = vlaneseq
      %v415 = vshrl.u32 %v414, 7
      %v416 = vsub.s32 0, %v415
      %v417 = vrot.slane %v412, %v416
      %vm419 = vcmask 31744
      %v421 = vsel %vm419, %v391, 0
      %v424 = vsel %vm419, %v392, 0
      %v427 = vsel %vm419, %v393, 0
      %v430 = vsel %vm419, %v394, 0
      %v433 = vsel %vm419, %v395, 0
      %v436 = vsel %vm419, %v396, 0
      %v439 = vsel %vm419, %v397, 0
      %v442 = vsel %vm419, %v398, 0
      %v445 = vsel %vm419, %v399, 0
      %v448 = vsel %vm419, %v400, 0
      %v451 = vsel %vm419, %v401, 0
      %v454 = vsel %vm419, %v402, 0
      %v457 = vsel %vm419, %v403, 0
      %v460 = vsel %vm419, %v404, 0
      %v463 = vsel %vm419, %v405, 0
      %v466 = vsel %vm419, %v406, 0
      %v469 = vsel %vm419, %v407, 0
      %v472 = vsel %vm419, %v408, 0
      %v475 = vsel %vm419, %v409, 0
      %v478 = vsel %vm419, %v410, 0
      %vm480 = vcmask 1043456
      %v482 = vsel %vm480, %v411, 0
      %484 = vmatprep.subr.mxu0 0.0
      %485 = vmatpush1.msra.mxu0 %v482
      %486 = vmatprep.subr.mxu0 0.0
      %487 = vmatpush1.msra.mxu0 0.0
      %488 = vmatprep.subr.mxu0 0.0
      %489 = vmatpush1.msra.mxu0 0.0
      %490 = vmatprep.subr.mxu0 0.0
      %491 = vmatpush1.msra.mxu0 0.0
      %492 = vmatprep.subr.mxu0 0.0
      %493 = vmatpush1.msra.mxu0 0.0
      %494 = vmatprep.subr.mxu0 0.0
      %495 = vmatpush1.msra.mxu0 0.0
      %496 = vmatprep.subr.mxu0 0.0
      %497 = vmatpush1.msra.mxu0 0.0
      %498 = vmatprep.subr.mxu0 0.0
      %499 = vmatpush1.msra.mxu0 0.0
      %500 = vmatprep.subr.mxu0 0.0
      %501 = vmatpush1.msra.mxu0 0.0
      %502 = vmatprep.subr.mxu0 0.0
      %503 = vmatpush1.msra.mxu0 0.0
      %504 = vmatprep.subr.mxu0 0.0
      %505 = vmatpush1.msra.mxu0 0.0
      %506 = vmatprep.subr.mxu0 0.0
      %507 = vmatpush1.msra.mxu0 0.0
      %508 = vmatprep.subr.mxu0 0.0
      %509 = vmatpush1.msra.mxu0 0.0
      %510 = vmatprep.subr.mxu0 0.0
      %511 = vmatpush1.msra.mxu0 0.0
      %512 = vmatprep.subr.mxu0 0.0
      %513 = vmatpush1.msra.mxu0 0.0
      %514 = vmatprep.subr.mxu0 0.0
      %515 = vmatpush1.msra.mxu0 0.0
      %516 = vmatprep.subr.mxu0 0.0
      %517 = vmatpush1.msra.mxu0 0.0
      %518 = vmatprep.subr.mxu0 0.0
      %519 = vmatpush1.msra.mxu0 0.0
      %520 = vmatprep.subr.mxu0 0.0
      %521 = vmatpush1.msra.mxu0 0.0
      %522 = vmatprep.subr.mxu0 0.0
      %523 = vmatpush1.msra.mxu0 0.0
      %524 = vmatprep.subr.mxu0 0.0
      %525 = vmatpush1.msra.mxu0 0.0
      %526 = vmatprep.subr.mxu0 0.0
      %527 = vmatpush1.msra.mxu0 0.0
      %528 = vmatprep.subr.mxu0 0.0
      %529 = vmatpush1.msra.mxu0 0.0
      %530 = vmatprep.subr.mxu0 0.0
      %531 = vmatpush1.msra.mxu0 0.0
      %532 = vmatprep.subr.mxu0 0.0
      %533 = vmatpush1.msra.mxu0 0.0
      %534 = vmatprep.subr.mxu0 0.0
      %535 = vmatpush1.msra.mxu0 0.0
      %536 = vmatprep.subr.mxu0 0.0
      %537 = vmatpush1.msra.mxu0 0.0
      %538 = vmatprep.subr.mxu0 0.0
      %539 = vmatpush1.msra.mxu0 0.0
      %540 = vmatprep.subr.mxu0 0.0
      %541 = vmatpush1.msra.mxu0 0.0
      %542 = vmatprep.subr.mxu0 0.0
      %543 = vmatpush1.msra.mxu0 0.0
      %544 = vmatprep.subr.mxu0 0.0
      %545 = vmatpush1.msra.mxu0 0.0
      %546 = vmatprep.subr.mxu0 0.0
      %547 = vmatpush1.msra.mxu0 0.0
      %548 = vmatprep.mubr.f32.mxu0 0.0
      %549 = vmatmul.mubr.f32.gmra.mrb[0].mxu0 %v421
      %v550 = vpop.f32.mrb[0].mxu0
      %v551 = vadd.f32 %v417, %v550
      %v552 = vpop.f32.mrb[0].mxu0
      %553 = vmatprep.mubr.f32.mxu0 0.0
      %554 = vmatmul.mubr.f32.gmra.mrb[0].mxu0 %v424
      %v555 = vpop.f32.mrb[0].mxu0
      %v556 = vadd.f32 %v417, %v555
      %v557 = vpop.f32.mrb[0].mxu0
      %558 = vmatprep.mubr.f32.mxu0 0.0
      %559 = vmatmul.mubr.f32.gmra.mrb[0].mxu0 %v427
      %v560 = vpop.f32.mrb[0].mxu0
      %v561 = vadd.f32 %v417, %v560
      %v562 = vpop.f32.mrb[0].mxu0
      %563 = vmatprep.mubr.f32.mxu0 0.0
      %564 = vmatmul.mubr.f32.gmra.mrb[0].mxu0 %v430
      %v565 = vpop.f32.mrb[0].mxu0
      %v566 = vadd.f32 %v417, %v565
      %v567 = vpop.f32.mrb[0].mxu0
      %568 = vmatprep.mubr.f32.mxu0 0.0
      %569 = vmatmul.mubr.f32.gmra.mrb[0].mxu0 %v433
      %v570 = vpop.f32.mrb[0].mxu0
      %v571 = vadd.f32 %v417, %v570
      %v572 = vpop.f32.mrb[0].mxu0
      %573 = vmatprep.mubr.f32.mxu0 0.0
      %574 = vmatmul.mubr.f32.gmra.mrb[0].mxu0 %v436
      %v575 = vpop.f32.mrb[0].mxu0
      %v576 = vadd.f32 %v417, %v575
      %v577 = vpop.f32.mrb[0].mxu0
      %578 = vmatprep.mubr.f32.mxu0 0.0
      %579 = vmatmul.mubr.f32.gmra.mrb[0].mxu0 %v439
      %v580 = vpop.f32.mrb[0].mxu0
      %v581 = vadd.f32 %v417, %v580
      %v582 = vpop.f32.mrb[0].mxu0
      %583 = vmatprep.mubr.f32.mxu0 0.0
      %584 = vmatmul.mubr.f32.gmra.mrb[0].mxu0 %v442
      %v585 = vpop.f32.mrb[0].mxu0
      %v586 = vadd.f32 %v417, %v585
      %v587 = vpop.f32.mrb[0].mxu0
      %588 = vmatprep.mubr.f32.mxu0 0.0
      %589 = vmatmul.mubr.f32.gmra.mrb[0].mxu0 %v445
      %v590 = vpop.f32.mrb[0].mxu0
      %v591 = vadd.f32 %v417, %v590
      %v592 = vpop.f32.mrb[0].mxu0
      %593 = vmatprep.mubr.f32.mxu0 0.0
      %594 = vmatmul.mubr.f32.gmra.mrb[0].mxu0 %v448
      %v595 = vpop.f32.mrb[0].mxu0
      %v596 = vadd.f32 %v417, %v595
      %v597 = vpop.f32.mrb[0].mxu0
      %598 = vmatprep.mubr.f32.mxu0 0.0
      %599 = vmatmul.mubr.f32.gmra.mrb[0].mxu0 %v451
      %v600 = vpop.f32.mrb[0].mxu0
      %v601 = vadd.f32 %v417, %v600
      %v602 = vpop.f32.mrb[0].mxu0
      %603 = vmatprep.mubr.f32.mxu0 0.0
      %604 = vmatmul.mubr.f32.gmra.mrb[0].mxu0 %v454
      %v605 = vpop.f32.mrb[0].mxu0
      %v606 = vadd.f32 %v417, %v605
      %v607 = vpop.f32.mrb[0].mxu0
      %608 = vmatprep.mubr.f32.mxu0 0.0
      %609 = vmatmul.mubr.f32.gmra.mrb[0].mxu0 %v457
      %v610 = vpop.f32.mrb[0].mxu0
      %v611 = vadd.f32 %v417, %v610
      %v612 = vpop.f32.mrb[0].mxu0
      %613 = vmatprep.mubr.f32.mxu0 0.0
      %614 = vmatmul.mubr.f32.gmra.mrb[0].mxu0 %v460
      %v615 = vpop.f32.mrb[0].mxu0
      %v616 = vadd.f32 %v417, %v615
      %v617 = vpop.f32.mrb[0].mxu0
      %618 = vmatprep.mubr.f32.mxu0 0.0
      %619 = vmatmul.mubr.f32.gmra.mrb[0].mxu0 %v463
      %v620 = vpop.f32.mrb[0].mxu0
      %v621 = vadd.f32 %v417, %v620
      %v622 = vpop.f32.mrb[0].mxu0
      %623 = vmatprep.mubr.f32.mxu0 0.0
      %624 = vmatmul.mubr.f32.gmra.mrb[0].mxu0 %v466
      %v625 = vpop.f32.mrb[0].mxu0
      %v626 = vadd.f32 %v417, %v625
      %v627 = vpop.f32.mrb[0].mxu0
      %628 = vmatprep.mubr.f32.mxu0 0.0
      %629 = vmatmul.mubr.f32.gmra.mrb[0].mxu0 %v469
      %v630 = vpop.f32.mrb[0].mxu0
      %v631 = vadd.f32 %v417, %v630
      %v632 = vpop.f32.mrb[0].mxu0
      %633 = vmatprep.mubr.f32.mxu0 0.0
      %634 = vmatmul.mubr.f32.gmra.mrb[0].mxu0 %v472
      %v635 = vpop.f32.mrb[0].mxu0
      %v636 = vadd.f32 %v417, %v635
      %v637 = vpop.f32.mrb[0].mxu0
      %638 = vmatprep.mubr.f32.mxu0 0.0
      %639 = vmatmul.mubr.f32.gmra.mrb[0].mxu0 %v475
      %v640 = vpop.f32.mrb[0].mxu0
      %v641 = vadd.f32 %v417, %v640
      %v642 = vpop.f32.mrb[0].mxu0
      %643 = vmatprep.mubr.f32.mxu0 0.0
      %644 = vmatmul.mubr.f32.gmra.mrb[0].mxu0 %v478
      %v645 = vpop.f32.mrb[0].mxu0
      %v646 = vadd.f32 %v417, %v645
      %v647 = vpop.f32.mrb[0].mxu0
      %648 = vdwg.mxu0
      %v649 = vxor.u32 %v551, 2147483648
      %v650 = vxor.u32 %v556, 2147483648
      %v651 = vxor.u32 %v561, 2147483648
      %v652 = vxor.u32 %v566, 2147483648
      %v653 = vxor.u32 %v571, 2147483648
      %v654 = vxor.u32 %v576, 2147483648
      %v655 = vxor.u32 %v581, 2147483648
      %v656 = vxor.u32 %v586, 2147483648
      %v657 = vxor.u32 %v591, 2147483648
      %v658 = vxor.u32 %v596, 2147483648
      %v659 = vxor.u32 %v601, 2147483648
      %v660 = vxor.u32 %v606, 2147483648
      %v661 = vxor.u32 %v611, 2147483648
      %v662 = vxor.u32 %v616, 2147483648
      %v663 = vxor.u32 %v621, 2147483648
      %v664 = vxor.u32 %v626, 2147483648
      %v665 = vxor.u32 %v631, 2147483648
      %v666 = vxor.u32 %v636, 2147483648
      %v667 = vxor.u32 %v641, 2147483648
      %v668 = vxor.u32 %v646, 2147483648
      %v669 = vmul.f32 %v649, 1.442695
      %v670 = vpow.pop %v669
      %v671 = vmul.f32 %v650, 1.442695
      %v672 = vpow.pop %v671
      %v673 = vmul.f32 %v651, 1.442695
      %v674 = vpow.pop %v673
      %v675 = vmul.f32 %v652, 1.442695
      %v676 = vpow.pop %v675
      %v677 = vmul.f32 %v653, 1.442695
      %v678 = vpow.pop %v677
      %v679 = vmul.f32 %v654, 1.442695
      %v680 = vpow.pop %v679
      %v681 = vmul.f32 %v655, 1.442695
      %v682 = vpow.pop %v681
      %v683 = vmul.f32 %v656, 1.442695
      %v684 = vpow.pop %v683
      %v685 = vmul.f32 %v657, 1.442695
      %v686 = vpow.pop %v685
      %v687 = vmul.f32 %v658, 1.442695
      %v688 = vpow.pop %v687
      %v689 = vmul.f32 %v659, 1.442695
      %v690 = vpow.pop %v689
      %v691 = vmul.f32 %v660, 1.442695
      %v692 = vpow.pop %v691
      %v693 = vmul.f32 %v661, 1.442695
      %v694 = vpow.pop %v693
      %v695 = vmul.f32 %v662, 1.442695
      %v696 = vpow.pop %v695
      %v697 = vmul.f32 %v663, 1.442695
      %v698 = vpow.pop %v697
      %v699 = vmul.f32 %v664, 1.442695
      %v700 = vpow.pop %v699
      %v701 = vmul.f32 %v665, 1.442695
      %v702 = vpow.pop %v701
      %v703 = vmul.f32 %v666, 1.442695
      %v704 = vpow.pop %v703
      %v705 = vmul.f32 %v667, 1.442695
      %v706 = vpow.pop %v705
      %v707 = vmul.f32 %v668, 1.442695
      %v708 = vpow.pop %v707
      %v709 = vadd.f32 %v670, 1.0
      %v710 = vadd.f32 %v672, 1.0
      %v711 = vadd.f32 %v674, 1.0
      %v712 = vadd.f32 %v676, 1.0
      %v713 = vadd.f32 %v678, 1.0
      %v714 = vadd.f32 %v680, 1.0
      %v715 = vadd.f32 %v682, 1.0
      %v716 = vadd.f32 %v684, 1.0
      %v717 = vadd.f32 %v686, 1.0
      %v718 = vadd.f32 %v688, 1.0
      %v719 = vadd.f32 %v690, 1.0
      %v720 = vadd.f32 %v692, 1.0
      %v721 = vadd.f32 %v694, 1.0
      %v722 = vadd.f32 %v696, 1.0
      %v723 = vadd.f32 %v698, 1.0
      %v724 = vadd.f32 %v700, 1.0
      %v725 = vadd.f32 %v702, 1.0
      %v726 = vadd.f32 %v704, 1.0
      %v727 = vadd.f32 %v706, 1.0
      %v728 = vadd.f32 %v708, 1.0
      %v729 = vrcp.pop %v709
      %v730 = vmul.f32 1.0, %v729
      %v731 = vrcp.pop %v710
      %v732 = vmul.f32 1.0, %v731
      %v733 = vrcp.pop %v711
      %v734 = vmul.f32 1.0, %v733
      %v735 = vrcp.pop %v712
      %v736 = vmul.f32 1.0, %v735
      %v737 = vrcp.pop %v713
      %v738 = vmul.f32 1.0, %v737
      %v739 = vrcp.pop %v714
      %v740 = vmul.f32 1.0, %v739
      %v741 = vrcp.pop %v715
      %v742 = vmul.f32 1.0, %v741
      %v743 = vrcp.pop %v716
      %v744 = vmul.f32 1.0, %v743
      %v745 = vrcp.pop %v717
      %v746 = vmul.f32 1.0, %v745
      %v747 = vrcp.pop %v718
      %v748 = vmul.f32 1.0, %v747
      %v749 = vrcp.pop %v719
      %v750 = vmul.f32 1.0, %v749
      %v751 = vrcp.pop %v720
      %v752 = vmul.f32 1.0, %v751
      %v753 = vrcp.pop %v721
      %v754 = vmul.f32 1.0, %v753
      %v755 = vrcp.pop %v722
      %v756 = vmul.f32 1.0, %v755
      %v757 = vrcp.pop %v723
      %v758 = vmul.f32 1.0, %v757
      %v759 = vrcp.pop %v724
      %v760 = vmul.f32 1.0, %v759
      %v761 = vrcp.pop %v725
      %v762 = vmul.f32 1.0, %v761
      %v763 = vrcp.pop %v726
      %v764 = vmul.f32 1.0, %v763
      %v765 = vrcp.pop %v727
      %v766 = vmul.f32 1.0, %v765
      %v767 = vrcp.pop %v728
      %v768 = vmul.f32 1.0, %v767
      %v769 = vmul.f32 %v551, %v730
      %v770 = vmul.f32 %v556, %v732
      %v771 = vmul.f32 %v561, %v734
      %v772 = vmul.f32 %v566, %v736
      %v773 = vmul.f32 %v571, %v738
      %v774 = vmul.f32 %v576, %v740
      %v775 = vmul.f32 %v581, %v742
      %v776 = vmul.f32 %v586, %v744
      %v777 = vmul.f32 %v591, %v746
      %v778 = vmul.f32 %v596, %v748
      %v779 = vmul.f32 %v601, %v750
      %v780 = vmul.f32 %v606, %v752
      %v781 = vmul.f32 %v611, %v754
      %v782 = vmul.f32 %v616, %v756
      %v783 = vmul.f32 %v621, %v758
      %v784 = vmul.f32 %v626, %v760
      %v785 = vmul.f32 %v631, %v762
      %v786 = vmul.f32 %v636, %v764
      %v787 = vmul.f32 %v641, %v766
      %v788 = vmul.f32 %v646, %v768
      %p789 = scmp.eq.s32.totalorder %s23, 0
      %s790 = scalar_select %p789, 1, 0
      %v791 = vstv %s790
      %vm792 = vcmp.eq.s32.totalorder %v791, 1
      %p793 = scmp.eq.s32.totalorder %s23, 1
      %s794 = scalar_select %p793, 1, 0
      %v795 = vstv %s794
      %vm796 = vcmp.eq.s32.totalorder %v795, 1
      %v797 = vsel %vm792, 1, 0
      %v798 = vsel %vm796, 1, 0
      %vm799 = vcmp.eq.s32.totalorder %v797, 1
      %vm800 = vcmp.eq.s32.totalorder %v798, 1
      %v801 = vsel %vm799, 0.0, %v769
      %v802 = vsel %vm799, 0.0, %v770
      %v803 = vsel 0, 0.0, %v771
      %v804 = vsel 0, 0.0, %v772
      %v805 = vsel 0, 0.0, %v773
      %v806 = vsel 0, 0.0, %v774
      %v807 = vsel 0, 0.0, %v775
      %v808 = vsel 0, 0.0, %v776
      %v809 = vsel 0, 0.0, %v777
      %v810 = vsel 0, 0.0, %v778
      %v811 = vsel 0, 0.0, %v779
      %v812 = vsel 0, 0.0, %v780
      %v813 = vsel 0, 0.0, %v781
      %v814 = vsel 0, 0.0, %v782
      %v815 = vsel 0, 0.0, %v783
      %v816 = vsel 0, 0.0, %v784
      %v817 = vsel 0, 0.0, %v785
      %v818 = vsel 0, 0.0, %v786
      %v819 = vsel %vm800, 0.0, %v787
      %v820 = vsel %vm800, 0.0, %v788
      %vm841 = vcmask 1040384
      %v842 = vrot.slane %v801, 7
      %v843 = vrot.slane %v802, 7
      %v844 = vsel %vm841, %v842, %v843
      %v845 = vrot.slane %v803, 7
      %v846 = vrot.slane %v804, 7
      %v847 = vsel %vm841, %v845, %v846
      %v848 = vrot.slane %v805, 7
      %v849 = vrot.slane %v806, 7
      %v850 = vsel %vm841, %v848, %v849
      %v851 = vrot.slane %v807, 7
      %v852 = vrot.slane %v808, 7
      %v853 = vsel %vm841, %v851, %v852
      %v854 = vrot.slane %v809, 7
      %v855 = vrot.slane %v810, 7
      %v856 = vsel %vm841, %v854, %v855
      %v857 = vrot.slane %v811, 7
      %v858 = vrot.slane %v812, 7
      %v859 = vsel %vm841, %v857, %v858
      %v860 = vrot.slane %v813, 7
      %v861 = vrot.slane %v814, 7
      %v862 = vsel %vm841, %v860, %v861
      %v863 = vrot.slane %v815, 7
      %v864 = vrot.slane %v816, 7
      %v865 = vsel %vm841, %v863, %v864
      %v866 = vrot.slane %v817, 7
      %v867 = vrot.slane %v818, 7
      %v868 = vsel %vm841, %v866, %v867
      %v869 = vrot.slane %v819, 7
      %v870 = vrot.slane %v820, 7
      %v871 = vsel %vm841, %v869, %v870
      %v902 = vsel %vm841, 0.0, %v842
      %v903 = vsel %vm841, 0.0, %v845
      %v904 = vsel %vm841, 0.0, %v848
      %v905 = vsel %vm841, 0.0, %v851
      %v906 = vsel %vm841, 0.0, %v854
      %v907 = vsel %vm841, 0.0, %v857
      %v908 = vsel %vm841, 0.0, %v860
      %v909 = vsel %vm841, 0.0, %v863
      %v910 = vsel %vm841, 0.0, %v866
      %v911 = vsel %vm841, 0.0, %v869
      %v912 = vsel %vm841, %v843, 0.0
      %v913 = vsel %vm841, %v846, 0.0
      %v914 = vsel %vm841, %v849, 0.0
      %v915 = vsel %vm841, %v852, 0.0
      %v916 = vsel %vm841, %v855, 0.0
      %v917 = vsel %vm841, %v858, 0.0
      %v918 = vsel %vm841, %v861, 0.0
      %v919 = vsel %vm841, %v864, 0.0
      %v920 = vsel %vm841, %v867, 0.0
      %v921 = vsel %vm841, %v870, 0.0
      %vm942 = vcmask 1046528
      %v943 = vrot.slane %v902, 1
      %v944 = vrot.slane %v844, 1
      %v945 = vsel %vm942, %v943, %v944
      %v946 = vrot.slane %v912, 1
      %v947 = vsel %vm942, %v944, %v946
      %v948 = vrot.slane %v903, 1
      %v949 = vrot.slane %v847, 1
      %v950 = vsel %vm942, %v948, %v949
      %v951 = vrot.slane %v913, 1
      %v952 = vsel %vm942, %v949, %v951
      %v953 = vrot.slane %v904, 1
      %v954 = vrot.slane %v850, 1
      %v955 = vsel %vm942, %v953, %v954
      %v956 = vrot.slane %v914, 1
      %v957 = vsel %vm942, %v954, %v956
      %v958 = vrot.slane %v905, 1
      %v959 = vrot.slane %v853, 1
      %v960 = vsel %vm942, %v958, %v959
      %v961 = vrot.slane %v915, 1
      %v962 = vsel %vm942, %v959, %v961
      %v963 = vrot.slane %v906, 1
      %v964 = vrot.slane %v856, 1
      %v965 = vsel %vm942, %v963, %v964
      %v966 = vrot.slane %v916, 1
      %v967 = vsel %vm942, %v964, %v966
      %v968 = vrot.slane %v907, 1
      %v969 = vrot.slane %v859, 1
      %v970 = vsel %vm942, %v968, %v969
      %v971 = vrot.slane %v917, 1
      %v972 = vsel %vm942, %v969, %v971
      %v973 = vrot.slane %v908, 1
      %v974 = vrot.slane %v862, 1
      %v975 = vsel %vm942, %v973, %v974
      %v976 = vrot.slane %v918, 1
      %v977 = vsel %vm942, %v974, %v976
      %v978 = vrot.slane %v909, 1
      %v979 = vrot.slane %v865, 1
      %v980 = vsel %vm942, %v978, %v979
      %v981 = vrot.slane %v919, 1
      %v982 = vsel %vm942, %v979, %v981
      %v983 = vrot.slane %v910, 1
      %v984 = vrot.slane %v868, 1
      %v985 = vsel %vm942, %v983, %v984
      %v986 = vrot.slane %v920, 1
      %v987 = vsel %vm942, %v984, %v986
      %v988 = vrot.slane %v911, 1
      %v989 = vrot.slane %v871, 1
      %v990 = vsel %vm942, %v988, %v989
      %v991 = vrot.slane %v921, 1
      %v992 = vsel %vm942, %v989, %v991
      %993 = vrot.lane.b32.xlu0 %v945, 2
      %v994 = vpop.permute.xlu0 %993
      %995 = vrot.lane.b32.xlu0 %v947, 2
      %v996 = vpop.permute.xlu0 %995
      %997 = vrot.lane.b32.xlu0 %v950, 2
      %v998 = vpop.permute.xlu0 %997
      %999 = vrot.lane.b32.xlu0 %v952, 2
      %v1000 = vpop.permute.xlu0 %999
      %1001 = vrot.lane.b32.xlu0 %v955, 2
      %v1002 = vpop.permute.xlu0 %1001
      %1003 = vrot.lane.b32.xlu0 %v957, 2
      %v1004 = vpop.permute.xlu0 %1003
      %1005 = vrot.lane.b32.xlu0 %v960, 2
      %v1006 = vpop.permute.xlu0 %1005
      %1007 = vrot.lane.b32.xlu0 %v962, 2
      %v1008 = vpop.permute.xlu0 %1007
      %1009 = vrot.lane.b32.xlu0 %v965, 2
      %v1010 = vpop.permute.xlu0 %1009
      %1011 = vrot.lane.b32.xlu0 %v967, 2
      %v1012 = vpop.permute.xlu0 %1011
      %1013 = vrot.lane.b32.xlu0 %v970, 2
      %v1014 = vpop.permute.xlu0 %1013
      %1015 = vrot.lane.b32.xlu0 %v972, 2
      %v1016 = vpop.permute.xlu0 %1015
      %1017 = vrot.lane.b32.xlu0 %v975, 2
      %v1018 = vpop.permute.xlu0 %1017
      %1019 = vrot.lane.b32.xlu0 %v977, 2
      %v1020 = vpop.permute.xlu0 %1019
      %1021 = vrot.lane.b32.xlu0 %v980, 2
      %v1022 = vpop.permute.xlu0 %1021
      %1023 = vrot.lane.b32.xlu0 %v982, 2
      %v1024 = vpop.permute.xlu0 %1023
      %1025 = vrot.lane.b32.xlu0 %v985, 2
      %v1026 = vpop.permute.xlu0 %1025
      %1027 = vrot.lane.b32.xlu0 %v987, 2
      %v1028 = vpop.permute.xlu0 %1027
      %1029 = vrot.lane.b32.xlu0 %v990, 2
      %v1030 = vpop.permute.xlu0 %1029
      %1031 = vrot.lane.b32.xlu0 %v992, 2
      %v1032 = vpop.permute.xlu0 %1031
      %vm1053 = vcmask 1045504
      %v1054 = vrot.slane %v902, 2
      %v1055 = vrot.slane %v844, 2
      %v1056 = vsel %vm1053, %v1054, %v1055
      %v1057 = vrot.slane %v912, 2
      %v1058 = vsel %vm1053, %v1055, %v1057
      %v1059 = vrot.slane %v903, 2
      %v1060 = vrot.slane %v847, 2
      %v1061 = vsel %vm1053, %v1059, %v1060
      %v1062 = vrot.slane %v913, 2
      %v1063 = vsel %vm1053, %v1060, %v1062
      %v1064 = vrot.slane %v904, 2
      %v1065 = vrot.slane %v850, 2
      %v1066 = vsel %vm1053, %v1064, %v1065
      %v1067 = vrot.slane %v914, 2
      %v1068 = vsel %vm1053, %v1065, %v1067
      %v1069 = vrot.slane %v905, 2
      %v1070 = vrot.slane %v853, 2
      %v1071 = vsel %vm1053, %v1069, %v1070
      %v1072 = vrot.slane %v915, 2
      %v1073 = vsel %vm1053, %v1070, %v1072
      %v1074 = vrot.slane %v906, 2
      %v1075 = vrot.slane %v856, 2
      %v1076 = vsel %vm1053, %v1074, %v1075
      %v1077 = vrot.slane %v916, 2
      %v1078 = vsel %vm1053, %v1075, %v1077
      %v1079 = vrot.slane %v907, 2
      %v1080 = vrot.slane %v859, 2
      %v1081 = vsel %vm1053, %v1079, %v1080
      %v1082 = vrot.slane %v917, 2
      %v1083 = vsel %vm1053, %v1080, %v1082
      %v1084 = vrot.slane %v908, 2
      %v1085 = vrot.slane %v862, 2
      %v1086 = vsel %vm1053, %v1084, %v1085
      %v1087 = vrot.slane %v918, 2
      %v1088 = vsel %vm1053, %v1085, %v1087
      %v1089 = vrot.slane %v909, 2
      %v1090 = vrot.slane %v865, 2
      %v1091 = vsel %vm1053, %v1089, %v1090
      %v1092 = vrot.slane %v919, 2
      %v1093 = vsel %vm1053, %v1090, %v1092
      %v1094 = vrot.slane %v910, 2
      %v1095 = vrot.slane %v868, 2
      %v1096 = vsel %vm1053, %v1094, %v1095
      %v1097 = vrot.slane %v920, 2
      %v1098 = vsel %vm1053, %v1095, %v1097
      %v1099 = vrot.slane %v911, 2
      %v1100 = vrot.slane %v871, 2
      %v1101 = vsel %vm1053, %v1099, %v1100
      %v1102 = vrot.slane %v921, 2
      %v1103 = vsel %vm1053, %v1100, %v1102
      %1104 = vrot.lane.b32.xlu0 %v1056, 4
      %v1105 = vpop.permute.xlu0 %1104
      %1106 = vrot.lane.b32.xlu0 %v1058, 4
      %v1107 = vpop.permute.xlu0 %1106
      %1108 = vrot.lane.b32.xlu0 %v1061, 4
      %v1109 = vpop.permute.xlu0 %1108
      %1110 = vrot.lane.b32.xlu0 %v1063, 4
      %v1111 = vpop.permute.xlu0 %1110
      %1112 = vrot.lane.b32.xlu0 %v1066, 4
      %v1113 = vpop.permute.xlu0 %1112
      %1114 = vrot.lane.b32.xlu0 %v1068, 4
      %v1115 = vpop.permute.xlu0 %1114
      %1116 = vrot.lane.b32.xlu0 %v1071, 4
      %v1117 = vpop.permute.xlu0 %1116
      %1118 = vrot.lane.b32.xlu0 %v1073, 4
      %v1119 = vpop.permute.xlu0 %1118
      %1120 = vrot.lane.b32.xlu0 %v1076, 4
      %v1121 = vpop.permute.xlu0 %1120
      %1122 = vrot.lane.b32.xlu0 %v1078, 4
      %v1123 = vpop.permute.xlu0 %1122
      %1124 = vrot.lane.b32.xlu0 %v1081, 4
      %v1125 = vpop.permute.xlu0 %1124
      %1126 = vrot.lane.b32.xlu0 %v1083, 4
      %v1127 = vpop.permute.xlu0 %1126
      %1128 = vrot.lane.b32.xlu0 %v1086, 4
      %v1129 = vpop.permute.xlu0 %1128
      %1130 = vrot.lane.b32.xlu0 %v1088, 4
      %v1131 = vpop.permute.xlu0 %1130
      %1132 = vrot.lane.b32.xlu0 %v1091, 4
      %v1133 = vpop.permute.xlu0 %1132
      %1134 = vrot.lane.b32.xlu0 %v1093, 4
      %v1135 = vpop.permute.xlu0 %1134
      %1136 = vrot.lane.b32.xlu0 %v1096, 4
      %v1137 = vpop.permute.xlu0 %1136
      %1138 = vrot.lane.b32.xlu0 %v1098, 4
      %v1139 = vpop.permute.xlu0 %1138
      %1140 = vrot.lane.b32.xlu0 %v1101, 4
      %v1141 = vpop.permute.xlu0 %1140
      %1142 = vrot.lane.b32.xlu0 %v1103, 4
      %v1143 = vpop.permute.xlu0 %1142
      %vm1164 = vcmask 15360
      %v1165 = vsel %vm1164, %v902, %v994
      %v1166 = vsel %vm1164, %v844, %v996
      %v1167 = vsel %vm1164, %v903, %v998
      %v1168 = vsel %vm1164, %v847, %v1000
      %v1169 = vsel %vm1164, %v904, %v1002
      %v1170 = vsel %vm1164, %v850, %v1004
      %v1171 = vsel %vm1164, %v905, %v1006
      %v1172 = vsel %vm1164, %v853, %v1008
      %v1173 = vsel %vm1164, %v906, %v1010
      %v1174 = vsel %vm1164, %v856, %v1012
      %v1175 = vsel %vm1164, %v907, %v1014
      %v1176 = vsel %vm1164, %v859, %v1016
      %v1177 = vsel %vm1164, %v908, %v1018
      %v1178 = vsel %vm1164, %v862, %v1020
      %v1179 = vsel %vm1164, %v909, %v1022
      %v1180 = vsel %vm1164, %v865, %v1024
      %v1181 = vsel %vm1164, %v910, %v1026
      %v1182 = vsel %vm1164, %v868, %v1028
      %v1183 = vsel %vm1164, %v911, %v1030
      %v1184 = vsel %vm1164, %v871, %v1032
      %v1185 = vsel %vm419, %v1165, %v1105
      %v1186 = vsel %vm419, %v1166, %v1107
      %v1187 = vsel %vm419, %v1167, %v1109
      %v1188 = vsel %vm419, %v1168, %v1111
      %v1189 = vsel %vm419, %v1169, %v1113
      %v1190 = vsel %vm419, %v1170, %v1115
      %v1191 = vsel %vm419, %v1171, %v1117
      %v1192 = vsel %vm419, %v1172, %v1119
      %v1193 = vsel %vm419, %v1173, %v1121
      %v1194 = vsel %vm419, %v1174, %v1123
      %v1195 = vsel %vm419, %v1175, %v1125
      %v1196 = vsel %vm419, %v1176, %v1127
      %v1197 = vsel %vm419, %v1177, %v1129
      %v1198 = vsel %vm419, %v1178, %v1131
      %v1199 = vsel %vm419, %v1179, %v1133
      %v1200 = vsel %vm419, %v1180, %v1135
      %v1201 = vsel %vm419, %v1181, %v1137
      %v1202 = vsel %vm419, %v1182, %v1139
      %v1203 = vsel %vm419, %v1183, %v1141
      %v1204 = vsel %vm419, %v1184, %v1143
      %v1205 = vld [vmem:[%s5] sm:$0x3f]
      %s1206 = scalar_lea.vmem %s5, 8
      %v1207 = vld [vmem:[%s1206] sm:$0x3f]
      %vm1208 = vcmask 48128
      %v1210 = vsel %vm1208, %v1187, 0
      %v1213 = vsel %vm1208, %v1188, 0
      %v1216 = vsel %vm1208, %v1189, 0
      %v1219 = vsel %vm1208, %v1190, 0
      %v1222 = vsel %vm1208, %v1191, 0
      %v1225 = vsel %vm1208, %v1192, 0
      %v1228 = vsel %vm1208, %v1193, 0
      %v1231 = vsel %vm1208, %v1194, 0
      %v1234 = vsel %vm1208, %v1195, 0
      %v1237 = vsel %vm1208, %v1196, 0
      %v1240 = vsel %vm1208, %v1197, 0
      %v1243 = vsel %vm1208, %v1198, 0
      %v1246 = vsel %vm1208, %v1199, 0
      %v1249 = vsel %vm1208, %v1200, 0
      %v1252 = vsel %vm1208, %v1201, 0
      %v1255 = vsel %vm1208, %v1202, 0
      %v1258 = vsel %vm1053, %v1207, 0
      %1260 = vmatprep.subr.mxu0 0.0
      %1261 = vmatpush1.msra.mxu0 %v1258
      %1262 = vmatprep.subr.mxu0 0.0
      %1263 = vmatpush1.msra.mxu0 0.0
      %1264 = vmatprep.subr.mxu0 0.0
      %1265 = vmatpush1.msra.mxu0 0.0
      %1266 = vmatprep.subr.mxu0 0.0
      %1267 = vmatpush1.msra.mxu0 0.0
      %1268 = vmatprep.subr.mxu0 0.0
      %1269 = vmatpush1.msra.mxu0 0.0
      %1270 = vmatprep.subr.mxu0 0.0
      %1271 = vmatpush1.msra.mxu0 0.0
      %1272 = vmatprep.subr.mxu0 0.0
      %1273 = vmatpush1.msra.mxu0 0.0
      %1274 = vmatprep.subr.mxu0 0.0
      %1275 = vmatpush1.msra.mxu0 0.0
      %1276 = vmatprep.subr.mxu0 0.0
      %1277 = vmatpush1.msra.mxu0 0.0
      %1278 = vmatprep.subr.mxu0 0.0
      %1279 = vmatpush1.msra.mxu0 0.0
      %1280 = vmatprep.subr.mxu0 0.0
      %1281 = vmatpush1.msra.mxu0 0.0
      %1282 = vmatprep.subr.mxu0 0.0
      %1283 = vmatpush1.msra.mxu0 0.0
      %1284 = vmatprep.subr.mxu0 0.0
      %1285 = vmatpush1.msra.mxu0 0.0
      %1286 = vmatprep.subr.mxu0 0.0
      %1287 = vmatpush1.msra.mxu0 0.0
      %1288 = vmatprep.subr.mxu0 0.0
      %1289 = vmatpush1.msra.mxu0 0.0
      %1290 = vmatprep.subr.mxu0 0.0
      %1291 = vmatpush1.msra.mxu0 0.0
      %1292 = vmatprep.subr.mxu0 0.0
      %1293 = vmatpush1.msra.mxu0 0.0
      %1294 = vmatprep.subr.mxu0 0.0
      %1295 = vmatpush1.msra.mxu0 0.0
      %1296 = vmatprep.subr.mxu0 0.0
      %1297 = vmatpush1.msra.mxu0 0.0
      %1298 = vmatprep.subr.mxu0 0.0
      %1299 = vmatpush1.msra.mxu0 0.0
      %1300 = vmatprep.subr.mxu0 0.0
      %1301 = vmatpush1.msra.mxu0 0.0
      %1302 = vmatprep.subr.mxu0 0.0
      %1303 = vmatpush1.msra.mxu0 0.0
      %1304 = vmatprep.subr.mxu0 0.0
      %1305 = vmatpush1.msra.mxu0 0.0
      %1306 = vmatprep.subr.mxu0 0.0
      %1307 = vmatpush1.msra.mxu0 0.0
      %1308 = vmatprep.subr.mxu0 0.0
      %1309 = vmatpush1.msra.mxu0 0.0
      %1310 = vmatprep.subr.mxu0 0.0
      %1311 = vmatpush1.msra.mxu0 0.0
      %1312 = vmatprep.subr.mxu0 0.0
      %1313 = vmatpush1.msra.mxu0 0.0
      %1314 = vmatprep.subr.mxu0 0.0
      %1315 = vmatpush1.msra.mxu0 0.0
      %1316 = vmatprep.subr.mxu0 0.0
      %1317 = vmatpush1.msra.mxu0 0.0
      %1318 = vmatprep.subr.mxu0 0.0
      %1319 = vmatpush1.msra.mxu0 0.0
      %1320 = vmatprep.subr.mxu0 0.0
      %1321 = vmatpush1.msra.mxu0 0.0
      %1322 = vmatprep.subr.mxu0 0.0
      %1323 = vmatpush1.msra.mxu0 0.0
      %1324 = vmatprep.mubr.f32.mxu0 0.0
      %1325 = vmatmul.mubr.f32.gmra.mrb[0].mxu0 %v1210
      %v1326 = vpop.f32.mrb[0].mxu0
      %v1327 = vadd.f32 0.0, %v1326
      %v1328 = vpop.f32.mrb[0].mxu0
      %1329 = vmatprep.mubr.f32.mxu0 0.0
      %1330 = vmatmul.mubr.f32.gmra.mrb[0].mxu0 %v1213
      %v1331 = vpop.f32.mrb[0].mxu0
      %v1332 = vadd.f32 0.0, %v1331
      %v1333 = vpop.f32.mrb[0].mxu0
      %1334 = vmatprep.mubr.f32.mxu0 0.0
      %1335 = vmatmul.mubr.f32.gmra.mrb[0].mxu0 %v1216
      %v1336 = vpop.f32.mrb[0].mxu0
      %v1337 = vadd.f32 0.0, %v1336
      %v1338 = vpop.f32.mrb[0].mxu0
      %1339 = vmatprep.mubr.f32.mxu0 0.0
      %1340 = vmatmul.mubr.f32.gmra.mrb[0].mxu0 %v1219
      %v1341 = vpop.f32.mrb[0].mxu0
      %v1342 = vadd.f32 0.0, %v1341
      %v1343 = vpop.f32.mrb[0].mxu0
      %1344 = vmatprep.mubr.f32.mxu0 0.0
      %1345 = vmatmul.mubr.f32.gmra.mrb[0].mxu0 %v1222
      %v1346 = vpop.f32.mrb[0].mxu0
      %v1347 = vadd.f32 0.0, %v1346
      %v1348 = vpop.f32.mrb[0].mxu0
      %1349 = vmatprep.mubr.f32.mxu0 0.0
      %1350 = vmatmul.mubr.f32.gmra.mrb[0].mxu0 %v1225
      %v1351 = vpop.f32.mrb[0].mxu0
      %v1352 = vadd.f32 0.0, %v1351
      %v1353 = vpop.f32.mrb[0].mxu0
      %1354 = vmatprep.mubr.f32.mxu0 0.0
      %1355 = vmatmul.mubr.f32.gmra.mrb[0].mxu0 %v1228
      %v1356 = vpop.f32.mrb[0].mxu0
      %v1357 = vadd.f32 0.0, %v1356
      %v1358 = vpop.f32.mrb[0].mxu0
      %1359 = vmatprep.mubr.f32.mxu0 0.0
      %1360 = vmatmul.mubr.f32.gmra.mrb[0].mxu0 %v1231
      %v1361 = vpop.f32.mrb[0].mxu0
      %v1362 = vadd.f32 0.0, %v1361
      %v1363 = vpop.f32.mrb[0].mxu0
      %1364 = vmatprep.mubr.f32.mxu0 0.0
      %1365 = vmatmul.mubr.f32.gmra.mrb[0].mxu0 %v1234
      %v1366 = vpop.f32.mrb[0].mxu0
      %v1367 = vadd.f32 0.0, %v1366
      %v1368 = vpop.f32.mrb[0].mxu0
      %1369 = vmatprep.mubr.f32.mxu0 0.0
      %1370 = vmatmul.mubr.f32.gmra.mrb[0].mxu0 %v1237
      %v1371 = vpop.f32.mrb[0].mxu0
      %v1372 = vadd.f32 0.0, %v1371
      %v1373 = vpop.f32.mrb[0].mxu0
      %1374 = vmatprep.mubr.f32.mxu0 0.0
      %1375 = vmatmul.mubr.f32.gmra.mrb[0].mxu0 %v1240
      %v1376 = vpop.f32.mrb[0].mxu0
      %v1377 = vadd.f32 0.0, %v1376
      %v1378 = vpop.f32.mrb[0].mxu0
      %1379 = vmatprep.mubr.f32.mxu0 0.0
      %1380 = vmatmul.mubr.f32.gmra.mrb[0].mxu0 %v1243
      %v1381 = vpop.f32.mrb[0].mxu0
      %v1382 = vadd.f32 0.0, %v1381
      %v1383 = vpop.f32.mrb[0].mxu0
      %1384 = vmatprep.mubr.f32.mxu0 0.0
      %1385 = vmatmul.mubr.f32.gmra.mrb[0].mxu0 %v1246
      %v1386 = vpop.f32.mrb[0].mxu0
      %v1387 = vadd.f32 0.0, %v1386
      %v1388 = vpop.f32.mrb[0].mxu0
      %1389 = vmatprep.mubr.f32.mxu0 0.0
      %1390 = vmatmul.mubr.f32.gmra.mrb[0].mxu0 %v1249
      %v1391 = vpop.f32.mrb[0].mxu0
      %v1392 = vadd.f32 0.0, %v1391
      %v1393 = vpop.f32.mrb[0].mxu0
      %1394 = vmatprep.mubr.f32.mxu0 0.0
      %1395 = vmatmul.mubr.f32.gmra.mrb[0].mxu0 %v1252
      %v1396 = vpop.f32.mrb[0].mxu0
      %v1397 = vadd.f32 0.0, %v1396
      %v1398 = vpop.f32.mrb[0].mxu0
      %1399 = vmatprep.mubr.f32.mxu0 0.0
      %1400 = vmatmul.mubr.f32.gmra.mrb[0].mxu0 %v1255
      %v1401 = vpop.f32.mrb[0].mxu0
      %v1402 = vadd.f32 0.0, %v1401
      %v1403 = vpop.f32.mrb[0].mxu0
      %1404 = vdwg.mxu0
      %v1406 = vsel %vm1208, %v1185, 0
      %v1409 = vsel %vm1208, %v1186, 0
      %v1412 = vsel %vm1053, %v1205, 0
      %1414 = vmatprep.subr.mxu0 0.0
      %1415 = vmatpush1.msra.mxu0 %v1412
      %1416 = vmatprep.subr.mxu0 0.0
      %1417 = vmatpush1.msra.mxu0 0.0
      %1418 = vmatprep.subr.mxu0 0.0
      %1419 = vmatpush1.msra.mxu0 0.0
      %1420 = vmatprep.subr.mxu0 0.0
      %1421 = vmatpush1.msra.mxu0 0.0
      %1422 = vmatprep.subr.mxu0 0.0
      %1423 = vmatpush1.msra.mxu0 0.0
      %1424 = vmatprep.subr.mxu0 0.0
      %1425 = vmatpush1.msra.mxu0 0.0
      %1426 = vmatprep.subr.mxu0 0.0
      %1427 = vmatpush1.msra.mxu0 0.0
      %1428 = vmatprep.subr.mxu0 0.0
      %1429 = vmatpush1.msra.mxu0 0.0
      %1430 = vmatprep.subr.mxu0 0.0
      %1431 = vmatpush1.msra.mxu0 0.0
      %1432 = vmatprep.subr.mxu0 0.0
      %1433 = vmatpush1.msra.mxu0 0.0
      %1434 = vmatprep.subr.mxu0 0.0
      %1435 = vmatpush1.msra.mxu0 0.0
      %1436 = vmatprep.subr.mxu0 0.0
      %1437 = vmatpush1.msra.mxu0 0.0
      %1438 = vmatprep.subr.mxu0 0.0
      %1439 = vmatpush1.msra.mxu0 0.0
      %1440 = vmatprep.subr.mxu0 0.0
      %1441 = vmatpush1.msra.mxu0 0.0
      %1442 = vmatprep.subr.mxu0 0.0
      %1443 = vmatpush1.msra.mxu0 0.0
      %1444 = vmatprep.subr.mxu0 0.0
      %1445 = vmatpush1.msra.mxu0 0.0
      %1446 = vmatprep.subr.mxu0 0.0
      %1447 = vmatpush1.msra.mxu0 0.0
      %1448 = vmatprep.subr.mxu0 0.0
      %1449 = vmatpush1.msra.mxu0 0.0
      %1450 = vmatprep.subr.mxu0 0.0
      %1451 = vmatpush1.msra.mxu0 0.0
      %1452 = vmatprep.subr.mxu0 0.0
      %1453 = vmatpush1.msra.mxu0 0.0
      %1454 = vmatprep.subr.mxu0 0.0
      %1455 = vmatpush1.msra.mxu0 0.0
      %1456 = vmatprep.subr.mxu0 0.0
      %1457 = vmatpush1.msra.mxu0 0.0
      %1458 = vmatprep.subr.mxu0 0.0
      %1459 = vmatpush1.msra.mxu0 0.0
      %1460 = vmatprep.subr.mxu0 0.0
      %1461 = vmatpush1.msra.mxu0 0.0
      %1462 = vmatprep.subr.mxu0 0.0
      %1463 = vmatpush1.msra.mxu0 0.0
      %1464 = vmatprep.subr.mxu0 0.0
      %1465 = vmatpush1.msra.mxu0 0.0
      %1466 = vmatprep.subr.mxu0 0.0
      %1467 = vmatpush1.msra.mxu0 0.0
      %1468 = vmatprep.subr.mxu0 0.0
      %1469 = vmatpush1.msra.mxu0 0.0
      %1470 = vmatprep.subr.mxu0 0.0
      %1471 = vmatpush1.msra.mxu0 0.0
      %1472 = vmatprep.subr.mxu0 0.0
      %1473 = vmatpush1.msra.mxu0 0.0
      %1474 = vmatprep.subr.mxu0 0.0
      %1475 = vmatpush1.msra.mxu0 0.0
      %1476 = vmatprep.subr.mxu0 0.0
      %1477 = vmatpush1.msra.mxu0 0.0
      %1478 = vmatprep.mubr.f32.mxu0 0.0
      %1479 = vmatmul.mubr.f32.gmra.mrb[0].mxu0 %v1406
      %v1480 = vpop.f32.mrb[0].mxu0
      %v1481 = vadd.f32 %v1327, %v1480
      %v1482 = vpop.f32.mrb[0].mxu0
      %1483 = vmatprep.mubr.f32.mxu0 0.0
      %1484 = vmatmul.mubr.f32.gmra.mrb[0].mxu0 %v1409
      %v1485 = vpop.f32.mrb[0].mxu0
      %v1486 = vadd.f32 %v1332, %v1485
      %v1487 = vpop.f32.mrb[0].mxu0
      %1488 = vmatprep.mubr.f32.mxu0 0.0
      %1489 = vmatmul.mubr.f32.gmra.mrb[0].mxu0 %v1210
      %v1490 = vpop.f32.mrb[0].mxu0
      %v1491 = vadd.f32 %v1337, %v1490
      %v1492 = vpop.f32.mrb[0].mxu0
      %1493 = vmatprep.mubr.f32.mxu0 0.0
      %1494 = vmatmul.mubr.f32.gmra.mrb[0].mxu0 %v1213
      %v1495 = vpop.f32.mrb[0].mxu0
      %v1496 = vadd.f32 %v1342, %v1495
      %v1497 = vpop.f32.mrb[0].mxu0
      %1498 = vmatprep.mubr.f32.mxu0 0.0
      %1499 = vmatmul.mubr.f32.gmra.mrb[0].mxu0 %v1216
      %v1500 = vpop.f32.mrb[0].mxu0
      %v1501 = vadd.f32 %v1347, %v1500
      %v1502 = vpop.f32.mrb[0].mxu0
      %1503 = vmatprep.mubr.f32.mxu0 0.0
      %1504 = vmatmul.mubr.f32.gmra.mrb[0].mxu0 %v1219
      %v1505 = vpop.f32.mrb[0].mxu0
      %v1506 = vadd.f32 %v1352, %v1505
      %v1507 = vpop.f32.mrb[0].mxu0
      %1508 = vmatprep.mubr.f32.mxu0 0.0
      %1509 = vmatmul.mubr.f32.gmra.mrb[0].mxu0 %v1222
      %v1510 = vpop.f32.mrb[0].mxu0
      %v1511 = vadd.f32 %v1357, %v1510
      %v1512 = vpop.f32.mrb[0].mxu0
      %1513 = vmatprep.mubr.f32.mxu0 0.0
      %1514 = vmatmul.mubr.f32.gmra.mrb[0].mxu0 %v1225
      %v1515 = vpop.f32.mrb[0].mxu0
      %v1516 = vadd.f32 %v1362, %v1515
      %v1517 = vpop.f32.mrb[0].mxu0
      %1518 = vmatprep.mubr.f32.mxu0 0.0
      %1519 = vmatmul.mubr.f32.gmra.mrb[0].mxu0 %v1228
      %v1520 = vpop.f32.mrb[0].mxu0
      %v1521 = vadd.f32 %v1367, %v1520
      %v1522 = vpop.f32.mrb[0].mxu0
      %1523 = vmatprep.mubr.f32.mxu0 0.0
      %1524 = vmatmul.mubr.f32.gmra.mrb[0].mxu0 %v1231
      %v1525 = vpop.f32.mrb[0].mxu0
      %v1526 = vadd.f32 %v1372, %v1525
      %v1527 = vpop.f32.mrb[0].mxu0
      %1528 = vmatprep.mubr.f32.mxu0 0.0
      %1529 = vmatmul.mubr.f32.gmra.mrb[0].mxu0 %v1234
      %v1530 = vpop.f32.mrb[0].mxu0
      %v1531 = vadd.f32 %v1377, %v1530
      %v1532 = vpop.f32.mrb[0].mxu0
      %1533 = vmatprep.mubr.f32.mxu0 0.0
      %1534 = vmatmul.mubr.f32.gmra.mrb[0].mxu0 %v1237
      %v1535 = vpop.f32.mrb[0].mxu0
      %v1536 = vadd.f32 %v1382, %v1535
      %v1537 = vpop.f32.mrb[0].mxu0
      %1538 = vmatprep.mubr.f32.mxu0 0.0
      %1539 = vmatmul.mubr.f32.gmra.mrb[0].mxu0 %v1240
      %v1540 = vpop.f32.mrb[0].mxu0
      %v1541 = vadd.f32 %v1387, %v1540
      %v1542 = vpop.f32.mrb[0].mxu0
      %1543 = vmatprep.mubr.f32.mxu0 0.0
      %1544 = vmatmul.mubr.f32.gmra.mrb[0].mxu0 %v1243
      %v1545 = vpop.f32.mrb[0].mxu0
      %v1546 = vadd.f32 %v1392, %v1545
      %v1547 = vpop.f32.mrb[0].mxu0
      %1548 = vmatprep.mubr.f32.mxu0 0.0
      %1549 = vmatmul.mubr.f32.gmra.mrb[0].mxu0 %v1246
      %v1550 = vpop.f32.mrb[0].mxu0
      %v1551 = vadd.f32 %v1397, %v1550
      %v1552 = vpop.f32.mrb[0].mxu0
      %1553 = vmatprep.mubr.f32.mxu0 0.0
      %1554 = vmatmul.mubr.f32.gmra.mrb[0].mxu0 %v1249
      %v1555 = vpop.f32.mrb[0].mxu0
      %v1556 = vadd.f32 %v1402, %v1555
      %v1557 = vpop.f32.mrb[0].mxu0
      %1558 = vdwg.mxu0
      %s1559 = scalar_lea.vmem %s5, 16
      %v1560 = vld [vmem:[%s1559] sm:$0x3f]
      %v1562 = vsel %vm1208, %v1203, 0
      %v1565 = vsel %vm1208, %v1204, 0
      %v1568 = vsel %vm1053, %v1560, 0
      %1570 = vmatprep.subr.mxu0 0.0
      %1571 = vmatpush1.msra.mxu0 %v1568
      %1572 = vmatprep.subr.mxu0 0.0
      %1573 = vmatpush1.msra.mxu0 0.0
      %1574 = vmatprep.subr.mxu0 0.0
      %1575 = vmatpush1.msra.mxu0 0.0
      %1576 = vmatprep.subr.mxu0 0.0
      %1577 = vmatpush1.msra.mxu0 0.0
      %1578 = vmatprep.subr.mxu0 0.0
      %1579 = vmatpush1.msra.mxu0 0.0
      %1580 = vmatprep.subr.mxu0 0.0
      %1581 = vmatpush1.msra.mxu0 0.0
      %1582 = vmatprep.subr.mxu0 0.0
      %1583 = vmatpush1.msra.mxu0 0.0
      %1584 = vmatprep.subr.mxu0 0.0
      %1585 = vmatpush1.msra.mxu0 0.0
      %1586 = vmatprep.subr.mxu0 0.0
      %1587 = vmatpush1.msra.mxu0 0.0
      %1588 = vmatprep.subr.mxu0 0.0
      %1589 = vmatpush1.msra.mxu0 0.0
      %1590 = vmatprep.subr.mxu0 0.0
      %1591 = vmatpush1.msra.mxu0 0.0
      %1592 = vmatprep.subr.mxu0 0.0
      %1593 = vmatpush1.msra.mxu0 0.0
      %1594 = vmatprep.subr.mxu0 0.0
      %1595 = vmatpush1.msra.mxu0 0.0
      %1596 = vmatprep.subr.mxu0 0.0
      %1597 = vmatpush1.msra.mxu0 0.0
      %1598 = vmatprep.subr.mxu0 0.0
      %1599 = vmatpush1.msra.mxu0 0.0
      %1600 = vmatprep.subr.mxu0 0.0
      %1601 = vmatpush1.msra.mxu0 0.0
      %1602 = vmatprep.subr.mxu0 0.0
      %1603 = vmatpush1.msra.mxu0 0.0
      %1604 = vmatprep.subr.mxu0 0.0
      %1605 = vmatpush1.msra.mxu0 0.0
      %1606 = vmatprep.subr.mxu0 0.0
      %1607 = vmatpush1.msra.mxu0 0.0
      %1608 = vmatprep.subr.mxu0 0.0
      %1609 = vmatpush1.msra.mxu0 0.0
      %1610 = vmatprep.subr.mxu0 0.0
      %1611 = vmatpush1.msra.mxu0 0.0
      %1612 = vmatprep.subr.mxu0 0.0
      %1613 = vmatpush1.msra.mxu0 0.0
      %1614 = vmatprep.subr.mxu0 0.0
      %1615 = vmatpush1.msra.mxu0 0.0
      %1616 = vmatprep.subr.mxu0 0.0
      %1617 = vmatpush1.msra.mxu0 0.0
      %1618 = vmatprep.subr.mxu0 0.0
      %1619 = vmatpush1.msra.mxu0 0.0
      %1620 = vmatprep.subr.mxu0 0.0
      %1621 = vmatpush1.msra.mxu0 0.0
      %1622 = vmatprep.subr.mxu0 0.0
      %1623 = vmatpush1.msra.mxu0 0.0
      %1624 = vmatprep.subr.mxu0 0.0
      %1625 = vmatpush1.msra.mxu0 0.0
      %1626 = vmatprep.subr.mxu0 0.0
      %1627 = vmatpush1.msra.mxu0 0.0
      %1628 = vmatprep.subr.mxu0 0.0
      %1629 = vmatpush1.msra.mxu0 0.0
      %1630 = vmatprep.subr.mxu0 0.0
      %1631 = vmatpush1.msra.mxu0 0.0
      %1632 = vmatprep.subr.mxu0 0.0
      %1633 = vmatpush1.msra.mxu0 0.0
      %1634 = vmatprep.mubr.f32.mxu0 0.0
      %1635 = vmatmul.mubr.f32.gmra.mrb[0].mxu0 %v1216
      %v1636 = vpop.f32.mrb[0].mxu0
      %v1637 = vadd.f32 0.0, %v1636
      %v1638 = vpop.f32.mrb[0].mxu0
      %1639 = vmatprep.mubr.f32.mxu0 0.0
      %1640 = vmatmul.mubr.f32.gmra.mrb[0].mxu0 %v1219
      %v1641 = vpop.f32.mrb[0].mxu0
      %v1642 = vadd.f32 0.0, %v1641
      %v1643 = vpop.f32.mrb[0].mxu0
      %1644 = vmatprep.mubr.f32.mxu0 0.0
      %1645 = vmatmul.mubr.f32.gmra.mrb[0].mxu0 %v1222
      %v1646 = vpop.f32.mrb[0].mxu0
      %v1647 = vadd.f32 0.0, %v1646
      %v1648 = vpop.f32.mrb[0].mxu0
      %1649 = vmatprep.mubr.f32.mxu0 0.0
      %1650 = vmatmul.mubr.f32.gmra.mrb[0].mxu0 %v1225
      %v1651 = vpop.f32.mrb[0].mxu0
      %v1652 = vadd.f32 0.0, %v1651
      %v1653 = vpop.f32.mrb[0].mxu0
      %1654 = vmatprep.mubr.f32.mxu0 0.0
      %1655 = vmatmul.mubr.f32.gmra.mrb[0].mxu0 %v1228
      %v1656 = vpop.f32.mrb[0].mxu0
      %v1657 = vadd.f32 0.0, %v1656
      %v1658 = vpop.f32.mrb[0].mxu0
      %1659 = vmatprep.mubr.f32.mxu0 0.0
      %1660 = vmatmul.mubr.f32.gmra.mrb[0].mxu0 %v1231
      %v1661 = vpop.f32.mrb[0].mxu0
      %v1662 = vadd.f32 0.0, %v1661
      %v1663 = vpop.f32.mrb[0].mxu0
      %1664 = vmatprep.mubr.f32.mxu0 0.0
      %1665 = vmatmul.mubr.f32.gmra.mrb[0].mxu0 %v1234
      %v1666 = vpop.f32.mrb[0].mxu0
      %v1667 = vadd.f32 0.0, %v1666
      %v1668 = vpop.f32.mrb[0].mxu0
      %1669 = vmatprep.mubr.f32.mxu0 0.0
      %1670 = vmatmul.mubr.f32.gmra.mrb[0].mxu0 %v1237
      %v1671 = vpop.f32.mrb[0].mxu0
      %v1672 = vadd.f32 0.0, %v1671
      %v1673 = vpop.f32.mrb[0].mxu0
      %1674 = vmatprep.mubr.f32.mxu0 0.0
      %1675 = vmatmul.mubr.f32.gmra.mrb[0].mxu0 %v1240
      %v1676 = vpop.f32.mrb[0].mxu0
      %v1677 = vadd.f32 0.0, %v1676
      %v1678 = vpop.f32.mrb[0].mxu0
      %1679 = vmatprep.mubr.f32.mxu0 0.0
      %1680 = vmatmul.mubr.f32.gmra.mrb[0].mxu0 %v1243
      %v1681 = vpop.f32.mrb[0].mxu0
      %v1682 = vadd.f32 0.0, %v1681
      %v1683 = vpop.f32.mrb[0].mxu0
      %1684 = vmatprep.mubr.f32.mxu0 0.0
      %1685 = vmatmul.mubr.f32.gmra.mrb[0].mxu0 %v1246
      %v1686 = vpop.f32.mrb[0].mxu0
      %v1687 = vadd.f32 0.0, %v1686
      %v1688 = vpop.f32.mrb[0].mxu0
      %1689 = vmatprep.mubr.f32.mxu0 0.0
      %1690 = vmatmul.mubr.f32.gmra.mrb[0].mxu0 %v1249
      %v1691 = vpop.f32.mrb[0].mxu0
      %v1692 = vadd.f32 0.0, %v1691
      %v1693 = vpop.f32.mrb[0].mxu0
      %1694 = vmatprep.mubr.f32.mxu0 0.0
      %1695 = vmatmul.mubr.f32.gmra.mrb[0].mxu0 %v1252
      %v1696 = vpop.f32.mrb[0].mxu0
      %v1697 = vadd.f32 0.0, %v1696
      %v1698 = vpop.f32.mrb[0].mxu0
      %1699 = vmatprep.mubr.f32.mxu0 0.0
      %1700 = vmatmul.mubr.f32.gmra.mrb[0].mxu0 %v1255
      %v1701 = vpop.f32.mrb[0].mxu0
      %v1702 = vadd.f32 0.0, %v1701
      %v1703 = vpop.f32.mrb[0].mxu0
      %1704 = vmatprep.mubr.f32.mxu0 0.0
      %1705 = vmatmul.mubr.f32.gmra.mrb[0].mxu0 %v1562
      %v1706 = vpop.f32.mrb[0].mxu0
      %v1707 = vadd.f32 0.0, %v1706
      %v1708 = vpop.f32.mrb[0].mxu0
      %1709 = vmatprep.mubr.f32.mxu0 0.0
      %1710 = vmatmul.mubr.f32.gmra.mrb[0].mxu0 %v1565
      %v1711 = vpop.f32.mrb[0].mxu0
      %v1712 = vadd.f32 0.0, %v1711
      %v1713 = vpop.f32.mrb[0].mxu0
      %1714 = vdwg.mxu0
      %v1715 = vadd.f32 %v1481, %v1637
      %v1716 = vadd.f32 %v1486, %v1642
      %v1717 = vadd.f32 %v1491, %v1647
      %v1718 = vadd.f32 %v1496, %v1652
      %v1719 = vadd.f32 %v1501, %v1657
      %v1720 = vadd.f32 %v1506, %v1662
      %v1721 = vadd.f32 %v1511, %v1667
      %v1722 = vadd.f32 %v1516, %v1672
      %v1723 = vadd.f32 %v1521, %v1677
      %v1724 = vadd.f32 %v1526, %v1682
      %v1725 = vadd.f32 %v1531, %v1687
      %v1726 = vadd.f32 %v1536, %v1692
      %v1727 = vadd.f32 %v1541, %v1697
      %v1728 = vadd.f32 %v1546, %v1702
      %v1729 = vadd.f32 %v1551, %v1707
      %v1730 = vadd.f32 %v1556, %v1712
      %v1731 = vld [vmem:[%s6] sm:$0x1]
      %v1733 = vlaneseq
      %v1734 = vshrl.u32 %v1733, 7
      %v1735 = vsub.s32 0, %v1734
      %v1736 = vrot.slane %v1731, %v1735
      %v1738 = vadd.f32 %v1715, %v1736
      %v1739 = vadd.f32 %v1716, %v1736
      %v1740 = vadd.f32 %v1717, %v1736
      %v1741 = vadd.f32 %v1718, %v1736
      %v1742 = vadd.f32 %v1719, %v1736
      %v1743 = vadd.f32 %v1720, %v1736
      %v1744 = vadd.f32 %v1721, %v1736
      %v1745 = vadd.f32 %v1722, %v1736
      %v1746 = vadd.f32 %v1723, %v1736
      %v1747 = vadd.f32 %v1724, %v1736
      %v1748 = vadd.f32 %v1725, %v1736
      %v1749 = vadd.f32 %v1726, %v1736
      %v1750 = vadd.f32 %v1727, %v1736
      %v1751 = vadd.f32 %v1728, %v1736
      %v1752 = vadd.f32 %v1729, %v1736
      %v1753 = vadd.f32 %v1730, %v1736
      %v1754 = vxor.u32 %v1738, 2147483648
      %v1755 = vxor.u32 %v1739, 2147483648
      %v1756 = vxor.u32 %v1740, 2147483648
      %v1757 = vxor.u32 %v1741, 2147483648
      %v1758 = vxor.u32 %v1742, 2147483648
      %v1759 = vxor.u32 %v1743, 2147483648
      %v1760 = vxor.u32 %v1744, 2147483648
      %v1761 = vxor.u32 %v1745, 2147483648
      %v1762 = vxor.u32 %v1746, 2147483648
      %v1763 = vxor.u32 %v1747, 2147483648
      %v1764 = vxor.u32 %v1748, 2147483648
      %v1765 = vxor.u32 %v1749, 2147483648
      %v1766 = vxor.u32 %v1750, 2147483648
      %v1767 = vxor.u32 %v1751, 2147483648
      %v1768 = vxor.u32 %v1752, 2147483648
      %v1769 = vxor.u32 %v1753, 2147483648
      %v1770 = vmul.f32 %v1754, 1.442695
      %v1771 = vpow.pop %v1770
      %v1772 = vmul.f32 %v1755, 1.442695
      %v1773 = vpow.pop %v1772
      %v1774 = vmul.f32 %v1756, 1.442695
      %v1775 = vpow.pop %v1774
      %v1776 = vmul.f32 %v1757, 1.442695
      %v1777 = vpow.pop %v1776
      %v1778 = vmul.f32 %v1758, 1.442695
      %v1779 = vpow.pop %v1778
      %v1780 = vmul.f32 %v1759, 1.442695
      %v1781 = vpow.pop %v1780
      %v1782 = vmul.f32 %v1760, 1.442695
      %v1783 = vpow.pop %v1782
      %v1784 = vmul.f32 %v1761, 1.442695
      %v1785 = vpow.pop %v1784
      %v1786 = vmul.f32 %v1762, 1.442695
      %v1787 = vpow.pop %v1786
      %v1788 = vmul.f32 %v1763, 1.442695
      %v1789 = vpow.pop %v1788
      %v1790 = vmul.f32 %v1764, 1.442695
      %v1791 = vpow.pop %v1790
      %v1792 = vmul.f32 %v1765, 1.442695
      %v1793 = vpow.pop %v1792
      %v1794 = vmul.f32 %v1766, 1.442695
      %v1795 = vpow.pop %v1794
      %v1796 = vmul.f32 %v1767, 1.442695
      %v1797 = vpow.pop %v1796
      %v1798 = vmul.f32 %v1768, 1.442695
      %v1799 = vpow.pop %v1798
      %v1800 = vmul.f32 %v1769, 1.442695
      %v1801 = vpow.pop %v1800
      %v1802 = vadd.f32 %v1771, 1.0
      %v1803 = vadd.f32 %v1773, 1.0
      %v1804 = vadd.f32 %v1775, 1.0
      %v1805 = vadd.f32 %v1777, 1.0
      %v1806 = vadd.f32 %v1779, 1.0
      %v1807 = vadd.f32 %v1781, 1.0
      %v1808 = vadd.f32 %v1783, 1.0
      %v1809 = vadd.f32 %v1785, 1.0
      %v1810 = vadd.f32 %v1787, 1.0
      %v1811 = vadd.f32 %v1789, 1.0
      %v1812 = vadd.f32 %v1791, 1.0
      %v1813 = vadd.f32 %v1793, 1.0
      %v1814 = vadd.f32 %v1795, 1.0
      %v1815 = vadd.f32 %v1797, 1.0
      %v1816 = vadd.f32 %v1799, 1.0
      %v1817 = vadd.f32 %v1801, 1.0
      %v1818 = vrcp.pop %v1802
      %v1819 = vmul.f32 1.0, %v1818
      %v1820 = vrcp.pop %v1803
      %v1821 = vmul.f32 1.0, %v1820
      %v1822 = vrcp.pop %v1804
      %v1823 = vmul.f32 1.0, %v1822
      %v1824 = vrcp.pop %v1805
      %v1825 = vmul.f32 1.0, %v1824
      %v1826 = vrcp.pop %v1806
      %v1827 = vmul.f32 1.0, %v1826
      %v1828 = vrcp.pop %v1807
      %v1829 = vmul.f32 1.0, %v1828
      %v1830 = vrcp.pop %v1808
      %v1831 = vmul.f32 1.0, %v1830
      %v1832 = vrcp.pop %v1809
      %v1833 = vmul.f32 1.0, %v1832
      %v1834 = vrcp.pop %v1810
      %v1835 = vmul.f32 1.0, %v1834
      %v1836 = vrcp.pop %v1811
      %v1837 = vmul.f32 1.0, %v1836
      %v1838 = vrcp.pop %v1812
      %v1839 = vmul.f32 1.0, %v1838
      %v1840 = vrcp.pop %v1813
      %v1841 = vmul.f32 1.0, %v1840
      %v1842 = vrcp.pop %v1814
      %v1843 = vmul.f32 1.0, %v1842
      %v1844 = vrcp.pop %v1815
      %v1845 = vmul.f32 1.0, %v1844
      %v1846 = vrcp.pop %v1816
      %v1847 = vmul.f32 1.0, %v1846
      %v1848 = vrcp.pop %v1817
      %v1849 = vmul.f32 1.0, %v1848
      %v1850 = vmul.f32 %v1738, %v1819
      %v1851 = vmul.f32 %v1739, %v1821
      %v1852 = vmul.f32 %v1740, %v1823
      %v1853 = vmul.f32 %v1741, %v1825
      %v1854 = vmul.f32 %v1742, %v1827
      %v1855 = vmul.f32 %v1743, %v1829
      %v1856 = vmul.f32 %v1744, %v1831
      %v1857 = vmul.f32 %v1745, %v1833
      %v1858 = vmul.f32 %v1746, %v1835
      %v1859 = vmul.f32 %v1747, %v1837
      %v1860 = vmul.f32 %v1748, %v1839
      %v1861 = vmul.f32 %v1749, %v1841
      %v1862 = vmul.f32 %v1750, %v1843
      %v1863 = vmul.f32 %v1751, %v1845
      %v1864 = vmul.f32 %v1752, %v1847
      %v1865 = vmul.f32 %v1753, %v1849
      %v1866 = vadd.f32 %v1850, %v393
      %v1867 = vadd.f32 %v1851, %v394
      %v1868 = vadd.f32 %v1852, %v395
      %v1869 = vadd.f32 %v1853, %v396
      %v1870 = vadd.f32 %v1854, %v397
      %v1871 = vadd.f32 %v1855, %v398
      %v1872 = vadd.f32 %v1856, %v399
      %v1873 = vadd.f32 %v1857, %v400
      %v1874 = vadd.f32 %v1858, %v401
      %v1875 = vadd.f32 %v1859, %v402
      %v1876 = vadd.f32 %v1860, %v403
      %v1877 = vadd.f32 %v1861, %v404
      %v1878 = vadd.f32 %v1862, %v405
      %v1879 = vadd.f32 %v1863, %v406
      %v1880 = vadd.f32 %v1864, %v407
      %v1881 = vadd.f32 %v1865, %v408
      %1882 = vst.msk [vmem:[%s389] sm:$0xff] %vm419, %v1866
      %1883 = vst.msk [vmem:[%s389 + $0x8] sm:$0xff] %vm419, %v1867
      %1884 = vst.msk [vmem:[%s389 + $0x10] sm:$0xff] %vm419, %v1868
      %1885 = vst.msk [vmem:[%s389 + $0x18] sm:$0xff] %vm419, %v1869
      %1886 = vst.msk [vmem:[%s389 + $0x20] sm:$0xff] %vm419, %v1870
      %1887 = vst.msk [vmem:[%s389 + $0x28] sm:$0xff] %vm419, %v1871
      %1888 = vst.msk [vmem:[%s389 + $0x30] sm:$0xff] %vm419, %v1872
      %1889 = vst.msk [vmem:[%s389 + $0x38] sm:$0xff] %vm419, %v1873
      %1890 = vst.msk [vmem:[%s389 + $0x40] sm:$0xff] %vm419, %v1874
      %1891 = vst.msk [vmem:[%s389 + $0x48] sm:$0xff] %vm419, %v1875
      %1892 = vst.msk [vmem:[%s389 + $0x50] sm:$0xff] %vm419, %v1876
      %1893 = vst.msk [vmem:[%s389 + $0x58] sm:$0xff] %vm419, %v1877
      %1894 = vst.msk [vmem:[%s389 + $0x60] sm:$0xff] %vm419, %v1878
      %1895 = vst.msk [vmem:[%s389 + $0x68] sm:$0xff] %vm419, %v1879
      %1896 = vst.msk [vmem:[%s389 + $0x70] sm:$0xff] %vm419, %v1880
      %1897 = vst.msk [vmem:[%s389 + $0x78] sm:$0xff] %vm419, %v1881
      %s1898 = smul.u32 8, %s23
      %p1899 = scmp.lt.s32.totalorder %s22, 1
      %s1900 = scalar_select %p1899, %s22, 1
      %p1901 = scmp.lt.s32.totalorder %s1898, 15
      %s1902 = scalar_select %p1901, %s1898, 15
      %s1903 = smul.addr %s1902, 2
      %s1904 = smul.addr %s1900, 32
      %s1905 = sadd.s32 %s1903, %s1904
      %s1906 = smul.addr %s1905, 8
      %s1907 = scalar_lea.vmem %s7, %s1906
      // Predicated region
      $region49: #{bottleneck_forward.1} parent=47 // pred_check
        %p1908 = pneg %p218
      $region50: #{bottleneck_forward.1} parent=47 // pred_check_branch
        %1910 = sbr.rel (%p1908) target = $region52
      $region51: #{bottleneck_forward.1} parent=47 // pred_region
        %s1911 = smul.u32 8, %s23
      $region52: #{bottleneck_forward.1} parent=47 // pred_fallthru
        _
    $region48: #{bottleneck_forward.1} parent=5 // pred_fallthru
      _
    %p1912 = scmp.le.s32.totalorder 2, %s13
    // Predicated region
    $region53: #{bottleneck_forward.1} parent=5 // pred_check
      %p1913 = pneg %p1912
    $region54: #{bottleneck_forward.1} parent=5 // pred_check_branch
      %1915 = sbr.rel (%p1913) target = $region56
    $region55: #{bottleneck_forward.1} parent=5 // pred_region
      %s1916 = ssub.s32 %s13, 2
      // Predicated region
      $region57: #{bottleneck_forward.1} parent=55 // pred_check
        %p1917 = pneg %p224
      $region58: #{bottleneck_forward.1} parent=55 // pred_check_branch
        %1919 = sbr.rel (%p1917) target = $region60
      $region59: #{bottleneck_forward.1} parent=55 // pred_region
        %s1920 = smul.u32 8, %s25
        %p1921 = scmp.lt.s32.totalorder %s24, 1
        %s1922 = scalar_select %p1921, %s24, 1
        %p1923 = scmp.lt.s32.totalorder %s1920, 15
        %s1924 = scalar_select %p1923, %s1920, 15
        %s1925 = smul.addr %s1924, 2
        %s1926 = smul.addr %s1922, 32
        %s1927 = sadd.s32 %s1925, %s1926
        %s1928 = smul.addr %s1927, 8
        %s1929 = scalar_lea.vmem %s7, %s1928
      $region60: #{bottleneck_forward.1} parent=55 // pred_fallthru
        _
    $region56: #{bottleneck_forward.1} parent=5 // pred_fallthru
      _
  $region6: #{bottleneck_forward.1} parent=0 // loop_footer
    %s17 = sadd.s32 1, %s13
  $region7: #{bottleneck_forward.1} parent=0 // loop_footer_branch
    %12 = sbr.rel target = $region3
  $region8: #{bottleneck_forward.1} parent=0 // loop_exit
    _

</llo_original>
